<compile_context>
chip_gen: v6e
topology: v6e:2x2x1
jax: 0.10.0
libtpu: 0.0.40
codegen_flags: <defaults>
</compile_context>

<pallas_src>
import math

import jax
import jax.numpy as jnp
import numpy as np
from jax import lax
from jax.experimental import pallas as pl
from jax.experimental.pallas import tpu as pltpu

G = 15            # number of groups
DG = 128          # embedding dims per group
AG = 3            # angle dims per group
EMB = G * DG      # 1920
ANG = G * AG      # 45
KAUG = AG + 2     # 5 : [angle(3), const, squared-norm] per group
KPAD = 128        # augmented K padded to one lane tile
EPS = 1e-12       # F.normalize eps
SCALE = 16.0 * G  # 16 * 15
INV_T = 1.0 / 200.0


def _round_up(a, b):
    return (a + b - 1) // b * b


def cos_classifier_kernel(xn_ref, xaug_ref, pn_ref, paug_ref, out_ref):
    """Compute one (Bp, TN) tile of logits.

    xn_ref   : (G, Bp, 128)  bf16  L2-normalized query embedding, group-major  (resident)
    xaug_ref : (G*Bp, 128)   f32   block-diag augmented query angle features   (resident)
    pn_ref   : (G, TN, 128)  bf16  L2-normalized proto embedding, group-major  (streamed)
    paug_ref : (TN, 128)     f32   augmented proto angle features              (streamed)
    out_ref  : (Bp, TN)      f32
    """
    g_dim, bp, _ = xn_ref.shape
    tn = out_ref.shape[1]

    # ---- angle branch: ONE fused matmul -> all G squared distances --------------------
    # Row g*Bp+b of xaug is nonzero only in group g's 5-block: [xa_g, 1, ||xa_g||^2];
    # every proto row holds [-2*pa_g, ||pa_g||^2, 1] per block, so
    #   d2[g*Bp+b, n] = ||xa[b,g] - pa[n,g]||^2.
    dn2 = (((1,), (1,)), ((), ()))
    d2 = lax.dot_general(xaug_ref[...], paug_ref[...], dn2,
                         preferred_element_type=jnp.float32)            # (G*Bp, TN)
    ang = jnp.sqrt(jnp.maximum(d2, 0.0)).reshape(g_dim, bp, tn)          # (G, Bp, TN)

    # Softmax over groups without a max-shift: exp(ang/200) can only overflow for
    # ||xa - pa|| > ~1.7e4, far outside any realistic feature magnitude.
    e = jnp.exp(ang * INV_T)                                             # (G, Bp, TN)
    denom = jnp.sum(e, axis=0)                                           # (Bp, TN)

    # ---- embedding branch: single G-batched bf16 contraction (one MXU op) -------------
    dots = lax.dot_general(xn_ref[...], pn_ref[...],
                           (((2,), (2,)), ((0,), (0,))),
                           preferred_element_type=jnp.float32)           # (G, Bp, TN)

    acc = jnp.sum(e * dots, axis=0)                                      # (Bp, TN)

    # logit = 16 * sum_g (softmax_g * 15) * <xn_g, pn_g> = 240 * acc / denom
    out_ref[...] = (SCALE * acc) * pl.reciprocal(denom, approx=True)


def precompute_proto(proto_weight, tile_n=512):
    """Proto-side prep.  Call ONCE per weight update and cache the result — this keeps
    the per-forward proto HBM traffic down to the kernel's own bf16 stream."""
    assert tile_n % 128 == 0 and tile_n >= 128
    w = proto_weight.astype(jnp.float32)
    N = w.shape[0]
    pe = w[:, :EMB]
    pa = w[:, EMB:].reshape(N, G, AG)

    # Pre-normalize (folds the old per-tile 1/||p|| multiply into the stream itself),
    # then lay out group-major bf16 (G, N, 128) for the batched in-kernel contraction.
    pn = pe / jnp.maximum(jnp.linalg.norm(pe, axis=1, keepdims=True), EPS)
    pn_g = jnp.transpose(pn.reshape(N, G, DG), (1, 0, 2)).astype(jnp.bfloat16)  # (G, N, 128)

    # Augmented angle features: block h of row n is [-2*pa_{n,h}, ||pa_{n,h}||^2, 1].
    p_aug = jnp.concatenate(
        [-2.0 * pa, jnp.sum(pa * pa, axis=-1, keepdims=True),
         jnp.ones((N, G, 1), jnp.float32)], axis=-1).reshape(N, G * KAUG)
    p_aug = jnp.pad(p_aug, ((0, 0), (0, KPAD - G * KAUG)))               # (N, 128) f32

    # Lane-dense class tiles; pick TN so the grid has >=2 steps whenever N > 128,
    # so ("parallel",) dimension semantics can shard N across v7x's two TensorCores.
    TN = min(tile_n, _round_up((N + 1) // 2, 128))
    n_pad = _round_up(N, TN)
    if n_pad != N:
        pn_g = jnp.pad(pn_g, ((0, 0), (0, n_pad - N), (0, 0)))
        p_aug = jnp.pad(p_aug, ((0, n_pad - N), (0, 0)))

    return dict(pn_g=pn_g, p_aug=p_aug, num_classes=N, tile_n=TN)


def cos_classifier_forward(x, proto_prep):
    """x: (B, 1965) f32 queries; proto_prep: output of precompute_proto.
    Returns logits (B, N) f32.  For best throughput batch queries to B >= 8
    (ideally 64-256): the wrapper pads B to a sublane multiple, so small B pays
    for the padding rows anyway."""
    pn_g = proto_prep["pn_g"]
    p_aug = proto_prep["p_aug"]
    N = proto_prep["num_classes"]
    TN = proto_prep["tile_n"]
    n_pad = pn_g.shape[1]

    x = x.astype(jnp.float32)
    B = x.shape[0]
    Bp = _round_up(max(B, 8), 8)   # dense sublane pushes on the MXU

    xe = x[:, :EMB]
    xa = x[:, EMB:].reshape(B, G, AG)

    # ---- query-side prep (tiny, done once per call — not per N tile) ----
    xn = xe / jnp.maximum(jnp.linalg.norm(xe, axis=1, keepdims=True), EPS)
    xn_g = jnp.transpose(xn.reshape(B, G, DG), (1, 0, 2))                 # (G, B, 128)
    xn_g = jnp.pad(xn_g, ((0, 0), (0, Bp - B), (0, 0))).astype(jnp.bfloat16)

    # Block-diagonal augmented angle query: row (g, b) holds [xa_{b,g}, 1, ||xa_{b,g}||^2]
    # in group g's 5-wide block and zeros elsewhere.
    xa_aug = jnp.concatenate(
        [xa, jnp.ones((B, G, 1), jnp.float32),
         jnp.sum(xa * xa, axis=-1, keepdims=True)], axis=-1)              # (B, G, 5)
    xa_aug = jnp.pad(xa_aug, ((0, Bp - B), (0, 0), (0, 0)))               # (Bp, G, 5)
    x_aug = jnp.einsum("gh,bgk->gbhk", jnp.eye(G, dtype=jnp.float32),
                       xa_aug).reshape(G * Bp, G * KAUG)
    x_aug = jnp.pad(x_aug, ((0, 0), (0, KPAD - G * KAUG)))                # (G*Bp, 128)

    out = pl.pallas_call(
        cos_classifier_kernel,
        out_shape=jax.ShapeDtypeStruct((Bp, n_pad), jnp.float32),
        grid=(n_pad // TN,),
        in_specs=[
            pl.BlockSpec((G, Bp, DG), lambda j: (0, 0, 0)),      # xn_g  (resident)
            pl.BlockSpec((G * Bp, KPAD), lambda j: (0, 0)),      # x_aug (resident)
            pl.BlockSpec((G, TN, DG), lambda j: (0, j, 0)),      # pn_g  (streamed, bf16)
            pl.BlockSpec((TN, KPAD), lambda j: (j, 0)),          # p_aug (streamed, f32)
        ],
        out_specs=pl.BlockSpec((Bp, TN), lambda j: (0, j)),
        compiler_params=pltpu.CompilerParams(
            dimension_semantics=("parallel",),            # megacore sharding of N on v7x
            vmem_limit_bytes=48 * 1024 * 1024),           # explicit (v5e default is 16 MiB)
    )(xn_g, x_aug, pn_g, p_aug)

    return out[:B, :N]


def reference_forward(x, w):
    """Pure-JAX mirror of the PyTorch forward_cos (argsort dead code omitted)."""
    B = x.shape[0]
    N = w.shape[0]
    xe = x[:, :EMB].reshape(B, 1, G, DG)
    xa = x[:, EMB:].reshape(B, 1, G, AG)
    pe = w[:, :EMB].reshape(1, N, G, DG)
    pa = w[:, EMB:].reshape(1, N, G, AG)
    ang_w = jnp.linalg.norm(xa - pa, axis=-1)                       # (B,N,G)
    ang_w2 = jax.nn.softmax(ang_w / 200.0, axis=-1) * G             # (B,N,G)
    xn = jnp.broadcast_to(xe, (B, N, G, DG)).reshape(B, N, G * DG)
    xn = xn / jnp.maximum(jnp.linalg.norm(xn, axis=-1, keepdims=True), EPS)
    pn = jnp.broadcast_to(pe, (B, N, G, DG)).reshape(B, N, G * DG)
    pn = pn / jnp.maximum(jnp.linalg.norm(pn, axis=-1, keepdims=True), EPS)
    logit = (xn * pn).reshape(B, N, G, DG) * ang_w2[..., None]
    return logit.reshape(B, N, -1).sum(-1) * 16.0


if __name__ == "__main__":
    B = 8                       # batch queries (priority-1 perf lever; wrapper pads any B)
    cls_num = 68
    emb_dim = EMB + ANG         # 1965 (15*128 emb + 15*3 angles), required by forward_cos reshapes

    key = jax.random.PRNGKey(0)
    kx, kw = jax.random.split(key)
    x = jax.random.normal(kx, (B, emb_dim), dtype=jnp.float32)

    # nn.Linear weight + kaiming_uniform_(a=sqrt(5)) => Uniform(-1/sqrt(fan_in), 1/sqrt(fan_in))
    bound = 1.0 / math.sqrt(emb_dim)
    proto_w = jax.random.uniform(kw, (cls_num, emb_dim), dtype=jnp.float32,
                                 minval=-bound, maxval=bound)

    prep = precompute_proto(proto_w)          # cache this across forwards in real use
    out = cos_classifier_forward(x, prep)
    out = jax.block_until_ready(out)

    ref = reference_forward(x, proto_w)
    assert out.shape == (B, cls_num)
    # Tolerance allows for the bf16 embedding stream + approximate reciprocal.
    np.testing.assert_allclose(np.asarray(out), np.asarray(ref), rtol=1e-2, atol=3e-2)

    print("KERNEL_OK")
</pallas_src>

<mosaic_0001>
module attributes {stable_mosaic.version = 11 : i64} {
  func.func @cos_classifier_kernel(%arg0: i32, %arg1: memref<15x8x128xbf16, #tpu.memory_space<vmem>>, %arg2: memref<120x128xf32, #tpu.memory_space<vmem>>, %arg3: memref<15x128x128xbf16, #tpu.memory_space<vmem>>, %arg4: memref<128x128xf32, #tpu.memory_space<vmem>>, %arg5: memref<8x128xf32, #tpu.memory_space<vmem>>) attributes {dimension_semantics = [#tpu.dimension_semantics<parallel>], iteration_bounds = array<i64: 1>, scalar_prefetch = 0 : i64, scratch_operands = 0 : i64, tpu.core_type = #tpu.core_type<tc>, window_params = [{pipeline_mode = #tpu.pipeline_mode<synchronous>, transform_indices = @transform_0, window_bounds = array<i64: 15, 8, 128>}, {pipeline_mode = #tpu.pipeline_mode<synchronous>, transform_indices = @transform_1, window_bounds = array<i64: 120, 128>}, {transform_indices = @transform_2, window_bounds = array<i64: 15, 128, 128>}, {transform_indices = @transform_3, window_bounds = array<i64: 128, 128>}, {transform_indices = @transform_4, window_bounds = array<i64: 8, 128>}]} {
    %c0 = arith.constant 0 : index
    %c0_0 = arith.constant 0 : index
    %0 = vector.load %arg2[%c0, %c0_0] : memref<120x128xf32, #tpu.memory_space<vmem>>, vector<120x128xf32>
    %c0_1 = arith.constant 0 : index
    %c0_2 = arith.constant 0 : index
    %1 = vector.load %arg4[%c0_1, %c0_2] : memref<128x128xf32, #tpu.memory_space<vmem>>, vector<128x128xf32>
    %cst = arith.constant dense<0.000000e+00> : vector<120x128xf32>
    %2 = tpu.matmul %0, %1, %cst {dimension_numbers = #tpu.dot_dimension_numbers<[1], [1], [0], [0], [0, 0, 1, 0], [], []>} : vector<120x128xf32>, vector<128x128xf32>, vector<120x128xf32> -> vector<120x128xf32>
    %cst_3 = arith.constant 0.000000e+00 : f32
    %3 = vector.broadcast %cst_3 : f32 to vector<120x128xf32>
    %4 = arith.maximumf %2, %3 : vector<120x128xf32>
    %5 = math.sqrt %4 : vector<120x128xf32>
    %6 = vector.shape_cast %5 : vector<120x128xf32> to vector<15x8x128xf32>
    %cst_4 = arith.constant 5.000000e-03 : f32
    %7 = vector.broadcast %cst_4 : f32 to vector<15x8x128xf32>
    %8 = arith.mulf %6, %7 : vector<15x8x128xf32>
    %9 = math.exp %8 : vector<15x8x128xf32>
    %cst_5 = arith.constant dense<0.000000e+00> : vector<8x128xf32>
    %10 = vector.multi_reduction <add>, %9, %cst_5 [0] : vector<15x8x128xf32> to vector<8x128xf32>
    %c0_6 = arith.constant 0 : index
    %c0_7 = arith.constant 0 : index
    %c0_8 = arith.constant 0 : index
    %11 = vector.load %arg1[%c0_6, %c0_7, %c0_8] : memref<15x8x128xbf16, #tpu.memory_space<vmem>>, vector<15x8x128xbf16>
    %c0_9 = arith.constant 0 : index
    %c0_10 = arith.constant 0 : index
    %c0_11 = arith.constant 0 : index
    %12 = vector.load %arg3[%c0_9, %c0_10, %c0_11] : memref<15x128x128xbf16, #tpu.memory_space<vmem>>, vector<15x128x128xbf16>
    %cst_12 = arith.constant dense<0.000000e+00> : vector<15x8x128xf32>
    %13 = tpu.matmul %11, %12, %cst_12 {dimension_numbers = #tpu.dot_dimension_numbers<[2], [2], [1], [1], [0, 0, 0, 1, 1, 1], [0], [0]>} : vector<15x8x128xbf16>, vector<15x128x128xbf16>, vector<15x8x128xf32> -> vector<15x8x128xf32>
    %14 = arith.mulf %9, %13 : vector<15x8x128xf32>
    %cst_13 = arith.constant dense<0.000000e+00> : vector<8x128xf32>
    %15 = vector.multi_reduction <add>, %14, %cst_13 [0] : vector<15x8x128xf32> to vector<8x128xf32>
    %cst_14 = arith.constant 2.400000e+02 : f32
    %16 = vector.broadcast %cst_14 : f32 to vector<8x128xf32>
    %17 = arith.mulf %16, %15 : vector<8x128xf32>
    %18 = tpu.reciprocal %10 {approx = true} : vector<8x128xf32> -> vector<8x128xf32>
    %19 = arith.mulf %17, %18 : vector<8x128xf32>
    %c0_15 = arith.constant 0 : index
    %c0_16 = arith.constant 0 : index
    %20 = vector.load %arg5[%c0_15, %c0_16] : memref<8x128xf32, #tpu.memory_space<vmem>>, vector<8x128xf32>
    tpu.vector_store %arg5[%c0_15, %c0_16], %19 {strides = array<i32>} : memref<8x128xf32, #tpu.memory_space<vmem>>, vector<8x128xf32>,
    return
  }
  func.func @transform_0(%arg0: i32) -> (i32, i32, i32) {
    %c0_i32 = arith.constant 0 : i32
    %c0_i32_0 = arith.constant 0 : i32
    %c0_i32_1 = arith.constant 0 : i32
    %c0_i32_2 = arith.constant 0 : i32
    return %c0_i32, %c0_i32_0, %c0_i32_1 : i32, i32, i32
  }
  func.func @transform_1(%arg0: i32) -> (i32, i32) {
    %c0_i32 = arith.constant 0 : i32
    %c0_i32_0 = arith.constant 0 : i32
    %c0_i32_1 = arith.constant 0 : i32
    return %c0_i32, %c0_i32_0 : i32, i32
  }
  func.func @transform_2(%arg0: i32) -> (i32, i32, i32) {
    %c0_i32 = arith.constant 0 : i32
    %c0_i32_0 = arith.constant 0 : i32
    %c0_i32_1 = arith.constant 0 : i32
    return %c0_i32, %arg0, %c0_i32_0 : i32, i32, i32
  }
  func.func @transform_3(%arg0: i32) -> (i32, i32) {
    %c0_i32 = arith.constant 0 : i32
    %c0_i32_0 = arith.constant 0 : i32
    return %arg0, %c0_i32 : i32, i32
  }
  func.func @transform_4(%arg0: i32) -> (i32, i32) {
    %c0_i32 = arith.constant 0 : i32
    %c0_i32_0 = arith.constant 0 : i32
    return %c0_i32, %arg0 : i32, i32
  }
}

</mosaic_0001>

<llo_original>
// kernel: tpu_custom_call.1
$region0: #{tpu_custom_call.1}
  #allocation0 [shape = 'u32[]', space=smem, size = 0x4, offset = 0x4, fixed_abs, tag = 'smem constant byte address 0x4 - core index']
  #allocation1 [shape = 'u32[144,128]{1,0:T(1,128)}', space=vmem, size = 0x12000, scoped, tag = 'internal scratch']
  %s0 = inlined_call_operand.hbm [shape: bf16[15,8,128], index: 0, kind: input, shape index: {}]
  %s1 = inlined_call_operand.hbm [shape: f32[120,128], index: 1, kind: input, shape index: {}]
  %s2 = inlined_call_operand.hbm [shape: bf16[15,128,128], index: 2, kind: input, shape index: {}]
  %s3 = inlined_call_operand.hbm [shape: f32[128,128], index: 3, kind: input, shape index: {}]
  %s4 = inlined_call_operand.hbm [shape: f32[8,128], index: 4, kind: output, shape index: {}]
  %s5 = sld [smem:[#allocation0]]
  $region42: #{tpu_custom_call.1} parent=0
    _
  %s7 = ssub.s32 1, %s5
  %s8 = scalar_select 0, %s7, %s5
  $region1: #{tpu_custom_call.1} parent=0
    #allocation2 [shape = 'u8[30720]{0}', space=vmem, size = 0x7800, scoped, tag = 'input window, operand 0, single buffered']
    #allocation3 [shape = 's32[1]{0}', space=sflag, size = 0x4, scoped, tag = 'scoped memory for tpu_custom_call.1']
    #allocation4 [shape = 's32[1]{0}', space=sflag, size = 0x4, scoped, tag = 'scoped memory for tpu_custom_call.1']
    #allocation5 [shape = 'u8[61440]{0}', space=vmem, size = 0xf000, scoped, tag = 'input window, operand 1, single buffered']
    #allocation6 [shape = 's32[1]{0}', space=sflag, size = 0x4, scoped, tag = 'scoped memory for tpu_custom_call.1']
    #allocation7 [shape = 'u8[491520]{0}', space=vmem, size = 0x78000, scoped, tag = 'input window, operand 2, single buffered']
    #allocation8 [shape = 'u8[65536]{0}', space=vmem, size = 0x10000, scoped, tag = 'input window, operand 3, single buffered']
    #allocation9 [shape = 's32[1]{0}', space=sflag, size = 0x4, scoped, tag = 'scoped memory for tpu_custom_call.1']
    #allocation10 [shape = 'u8[4096]{0}', space=vmem, size = 0x1000, scoped, tag = 'output window, operand 0, single buffered']
    %9 = vsyncpa [#allocation3], 0
    %10 = vsyncpa [#allocation6], 0
    %11 = vsyncpa [#allocation9], 0
    %12 = vsyncpa [#allocation4], 0
    // Predicated region
    $region2: #{tpu_custom_call.1} parent=1 // pred_check
      _
    $region3: #{tpu_custom_call.1} parent=1 // pred_check_branch
      %14 = sbr.rel (0) target = $region5
    $region4: #{tpu_custom_call.1} parent=1 // pred_region
      %s16 = ssub.s32 960, 960
      %17 = vsyncadd [#allocation3], %s16
      %s18 = sshll.u32 [#allocation2], 4
      %s19 = int_to_ptr.vmem [resolvable:$true] %s18
      %24 = dma.hbm_to_vmem [thread:$0]  %s0, 960, %s19, [#allocation3], 64, 64, 4
    $region5: #{tpu_custom_call.1} parent=1 // pred_fallthru
      _
    // Predicated region
    $region6: #{tpu_custom_call.1} parent=1 // pred_check
      _
    $region7: #{tpu_custom_call.1} parent=1 // pred_check_branch
      %26 = sbr.rel (0) target = $region9
    $region8: #{tpu_custom_call.1} parent=1 // pred_region
      %s28 = ssub.s32 1920, 1920
      %29 = vsyncadd [#allocation6], %s28
      %s30 = sshll.u32 [#allocation5], 4
      %s31 = int_to_ptr.vmem [resolvable:$true] %s30
      %36 = dma.hbm_to_vmem [thread:$0]  %s1, 1920, %s31, [#allocation6], 128, 128, 8
    $region9: #{tpu_custom_call.1} parent=1 // pred_fallthru
      _
    // Predicated region
    $region10: #{tpu_custom_call.1} parent=1 // pred_check
      _
    $region11: #{tpu_custom_call.1} parent=1 // pred_check_branch
      %38 = sbr.rel (0) target = $region13
    $region12: #{tpu_custom_call.1} parent=1 // pred_region
      %s40 = ssub.s32 15360, 15360
      %41 = vsyncadd [#allocation6], %s40
      %s42 = sshll.u32 [#allocation7], 4
      %s43 = int_to_ptr.vmem [resolvable:$true] %s42
      %48 = dma.hbm_to_vmem [thread:$0]  %s2, 15360, %s43, [#allocation6], 64, 64, 4
    $region13: #{tpu_custom_call.1} parent=1 // pred_fallthru
      _
    // Predicated region
    $region14: #{tpu_custom_call.1} parent=1 // pred_check
      _
    $region15: #{tpu_custom_call.1} parent=1 // pred_check_branch
      %50 = sbr.rel (0) target = $region17
    $region16: #{tpu_custom_call.1} parent=1 // pred_region
      %s52 = ssub.s32 2048, 2048
      %53 = vsyncadd [#allocation9], %s52
      %s54 = sshll.u32 [#allocation8], 4
      %s55 = int_to_ptr.vmem [resolvable:$true] %s54
      %60 = dma.hbm_to_vmem [thread:$0]  %s3, 2048, %s55, [#allocation9], 128, 128, 8
    $region17: #{tpu_custom_call.1} parent=1 // pred_fallthru
      _
    // Predicated region
    $region18: #{tpu_custom_call.1} parent=1 // pred_check
      _
    $region19: #{tpu_custom_call.1} parent=1 // pred_check_branch
      %62 = sbr.rel (0) target = $region21
    $region20: #{tpu_custom_call.1} parent=1 // pred_region
      %63 = dma.done [#allocation3], 960
    $region21: #{tpu_custom_call.1} parent=1 // pred_fallthru
      _
    // Predicated region
    $region22: #{tpu_custom_call.1} parent=1 // pred_check
      _
    $region23: #{tpu_custom_call.1} parent=1 // pred_check_branch
      %65 = sbr.rel (0) target = $region25
    $region24: #{tpu_custom_call.1} parent=1 // pred_region
      %66 = dma.done [#allocation6], 1920
    $region25: #{tpu_custom_call.1} parent=1 // pred_fallthru
      _
    // Predicated region
    $region26: #{tpu_custom_call.1} parent=1 // pred_check
      _
    $region27: #{tpu_custom_call.1} parent=1 // pred_check_branch
      %68 = sbr.rel (0) target = $region29
    $region28: #{tpu_custom_call.1} parent=1 // pred_region
      %69 = dma.done [#allocation6], 15360
    $region29: #{tpu_custom_call.1} parent=1 // pred_fallthru
      _
    // Predicated region
    $region30: #{tpu_custom_call.1} parent=1 // pred_check
      _
    $region31: #{tpu_custom_call.1} parent=1 // pred_check_branch
      %71 = sbr.rel (0) target = $region33
    $region32: #{tpu_custom_call.1} parent=1 // pred_region
      %72 = dma.done [#allocation9], 2048
    $region33: #{tpu_custom_call.1} parent=1 // pred_fallthru
      _
    %v74 = vld [vmem:[#allocation5] sm:$0xff]
    %v75 = vld [vmem:[#allocation5 + $0x8] sm:$0xff]
    %v76 = vld [vmem:[#allocation5 + $0x10] sm:$0xff]
    %v77 = vld [vmem:[#allocation5 + $0x18] sm:$0xff]
    %v78 = vld [vmem:[#allocation5 + $0x20] sm:$0xff]
    %v79 = vld [vmem:[#allocation5 + $0x28] sm:$0xff]
    %v80 = vld [vmem:[#allocation5 + $0x30] sm:$0xff]
    %v81 = vld [vmem:[#allocation5 + $0x38] sm:$0xff]
    %v82 = vld [vmem:[#allocation5 + $0x40] sm:$0xff]
    %v83 = vld [vmem:[#allocation5 + $0x48] sm:$0xff]
    %v84 = vld [vmem:[#allocation5 + $0x50] sm:$0xff]
    %v85 = vld [vmem:[#allocation5 + $0x58] sm:$0xff]
    %v86 = vld [vmem:[#allocation5 + $0x60] sm:$0xff]
    %v87 = vld [vmem:[#allocation5 + $0x68] sm:$0xff]
    %v88 = vld [vmem:[#allocation5 + $0x70] sm:$0xff]
    %v89 = vld [vmem:[#allocation8] sm:$0xff]
    %v90 = vld [vmem:[#allocation8 + $0x8] sm:$0xff]
    %v91 = vld [vmem:[#allocation8 + $0x10] sm:$0xff]
    %v92 = vld [vmem:[#allocation8 + $0x18] sm:$0xff]
    %v93 = vld [vmem:[#allocation8 + $0x20] sm:$0xff]
    %v94 = vld [vmem:[#allocation8 + $0x28] sm:$0xff]
    %v95 = vld [vmem:[#allocation8 + $0x30] sm:$0xff]
    %v96 = vld [vmem:[#allocation8 + $0x38] sm:$0xff]
    %v97 = vld [vmem:[#allocation8 + $0x40] sm:$0xff]
    %v98 = vld [vmem:[#allocation8 + $0x48] sm:$0xff]
    %v99 = vld [vmem:[#allocation8 + $0x50] sm:$0xff]
    %v100 = vld [vmem:[#allocation8 + $0x58] sm:$0xff]
    %v101 = vld [vmem:[#allocation8 + $0x60] sm:$0xff]
    %v102 = vld [vmem:[#allocation8 + $0x68] sm:$0xff]
    %v103 = vld [vmem:[#allocation8 + $0x70] sm:$0xff]
    %v104 = vld [vmem:[#allocation8 + $0x78] sm:$0xff]
    %105 = vmatprep.subr.mxu0 0.0
    %106 = vmatpush1.xpose.msra.mxu0 %v104
    %107 = vmatprep.subr.mxu0 0.0
    %108 = vmatpush1.xpose.msra.mxu0 %v103
    %109 = vmatprep.subr.mxu0 0.0
    %110 = vmatpush1.xpose.msra.mxu0 %v102
    %111 = vmatprep.subr.mxu0 0.0
    %112 = vmatpush1.xpose.msra.mxu0 %v101
    %113 = vmatprep.subr.mxu0 0.0
    %114 = vmatpush1.xpose.msra.mxu0 %v100
    %115 = vmatprep.subr.mxu0 0.0
    %116 = vmatpush1.xpose.msra.mxu0 %v99
    %117 = vmatprep.subr.mxu0 0.0
    %118 = vmatpush1.xpose.msra.mxu0 %v98
    %119 = vmatprep.subr.mxu0 0.0
    %120 = vmatpush1.xpose.msra.mxu0 %v97
    %121 = vmatprep.subr.mxu0 0.0
    %122 = vmatpush1.xpose.msra.mxu0 %v96
    %123 = vmatprep.subr.mxu0 0.0
    %124 = vmatpush1.xpose.msra.mxu0 %v95
    %125 = vmatprep.subr.mxu0 0.0
    %126 = vmatpush1.xpose.msra.mxu0 %v94
    %127 = vmatprep.subr.mxu0 0.0
    %128 = vmatpush1.xpose.msra.mxu0 %v93
    %129 = vmatprep.subr.mxu0 0.0
    %130 = vmatpush1.xpose.msra.mxu0 %v92
    %131 = vmatprep.subr.mxu0 0.0
    %132 = vmatpush1.xpose.msra.mxu0 %v91
    %133 = vmatprep.subr.mxu0 0.0
    %134 = vmatpush1.xpose.msra.mxu0 %v90
    %135 = vmatprep.subr.mxu0 0.0
    %136 = vmatpush1.xpose.msra.mxu0 %v89
    %137 = vmatprep.subr.mxu0 0.0
    %138 = vmatpush2.xpose.msra.mxu0 0.0
    %139 = vmatprep.subr.mxu0 0.0
    %140 = vmatpush2.xpose.msra.mxu0 0.0
    %141 = vmatprep.subr.mxu0 0.0
    %142 = vmatpush2.xpose.msra.mxu0 0.0
    %143 = vmatprep.subr.mxu0 0.0
    %144 = vmatpush2.xpose.msra.mxu0 0.0
    %145 = vmatprep.subr.mxu0 0.0
    %146 = vmatpush2.xpose.msra.mxu0 0.0
    %147 = vmatprep.subr.mxu0 0.0
    %148 = vmatpush2.xpose.msra.mxu0 0.0
    %149 = vmatprep.subr.mxu0 0.0
    %150 = vmatpush2.xpose.msra.mxu0 0.0
    %151 = vmatprep.subr.mxu0 0.0
    %152 = vmatpush2.xpose.msra.mxu0 0.0
    %153 = vmatprep.subr.mxu0 0.0
    %154 = vmatpush2.xpose.msra.mxu0 0.0
    %155 = vmatprep.subr.mxu0 0.0
    %156 = vmatpush2.xpose.msra.mxu0 0.0
    %157 = vmatprep.subr.mxu0 0.0
    %158 = vmatpush2.xpose.msra.mxu0 0.0
    %159 = vmatprep.subr.mxu0 0.0
    %160 = vmatpush2.xpose.msra.mxu0 0.0
    %161 = vmatprep.subr.mxu0 0.0
    %162 = vmatpush2.xpose.msra.mxu0 0.0
    %163 = vmatprep.subr.mxu0 0.0
    %164 = vmatpush2.xpose.msra.mxu0 0.0
    %165 = vmatprep.subr.mxu0 0.0
    %166 = vmatpush2.xpose.msra.mxu0 0.0
    %167 = vmatprep.subr.mxu0 0.0
    %168 = vmatpush2.xpose.msra.mxu0 0.0
    %169 = vmatprep.mubr.f32.mxu0 0.0
    %170 = vmatmul.mubr.f32.gmra.mxu0 %v74
    %v171 = vpop.f32.mrf.mxu0
    %v172 = vadd.f32 0.0, %v171
    %v173 = vpop.f32.mrf.mxu0
    %174 = vmatprep.mubr.f32.mxu0 0.0
    %175 = vmatmul.mubr.f32.gmra.mxu0 %v75
    %v176 = vpop.f32.mrf.mxu0
    %v177 = vadd.f32 0.0, %v176
    %v178 = vpop.f32.mrf.mxu0
    %179 = vmatprep.mubr.f32.mxu0 0.0
    %180 = vmatmul.mubr.f32.gmra.mxu0 %v76
    %v181 = vpop.f32.mrf.mxu0
    %v182 = vadd.f32 0.0, %v181
    %v183 = vpop.f32.mrf.mxu0
    %184 = vmatprep.mubr.f32.mxu0 0.0
    %185 = vmatmul.mubr.f32.gmra.mxu0 %v77
    %v186 = vpop.f32.mrf.mxu0
    %v187 = vadd.f32 0.0, %v186
    %v188 = vpop.f32.mrf.mxu0
    %189 = vmatprep.mubr.f32.mxu0 0.0
    %190 = vmatmul.mubr.f32.gmra.mxu0 %v78
    %v191 = vpop.f32.mrf.mxu0
    %v192 = vadd.f32 0.0, %v191
    %v193 = vpop.f32.mrf.mxu0
    %194 = vmatprep.mubr.f32.mxu0 0.0
    %195 = vmatmul.mubr.f32.gmra.mxu0 %v79
    %v196 = vpop.f32.mrf.mxu0
    %v197 = vadd.f32 0.0, %v196
    %v198 = vpop.f32.mrf.mxu0
    %199 = vmatprep.mubr.f32.mxu0 0.0
    %200 = vmatmul.mubr.f32.gmra.mxu0 %v80
    %v201 = vpop.f32.mrf.mxu0
    %v202 = vadd.f32 0.0, %v201
    %v203 = vpop.f32.mrf.mxu0
    %204 = vmatprep.mubr.f32.mxu0 0.0
    %205 = vmatmul.mubr.f32.gmra.mxu0 %v81
    %v206 = vpop.f32.mrf.mxu0
    %v207 = vadd.f32 0.0, %v206
    %v208 = vpop.f32.mrf.mxu0
    %209 = vmatprep.mubr.f32.mxu0 0.0
    %210 = vmatmul.mubr.f32.gmra.mxu0 %v82
    %v211 = vpop.f32.mrf.mxu0
    %v212 = vadd.f32 0.0, %v211
    %v213 = vpop.f32.mrf.mxu0
    %214 = vmatprep.mubr.f32.mxu0 0.0
    %215 = vmatmul.mubr.f32.gmra.mxu0 %v83
    %v216 = vpop.f32.mrf.mxu0
    %v217 = vadd.f32 0.0, %v216
    %v218 = vpop.f32.mrf.mxu0
    %219 = vmatprep.mubr.f32.mxu0 0.0
    %220 = vmatmul.mubr.f32.gmra.mxu0 %v84
    %v221 = vpop.f32.mrf.mxu0
    %v222 = vadd.f32 0.0, %v221
    %v223 = vpop.f32.mrf.mxu0
    %224 = vmatprep.mubr.f32.mxu0 0.0
    %225 = vmatmul.mubr.f32.gmra.mxu0 %v85
    %v226 = vpop.f32.mrf.mxu0
    %v227 = vadd.f32 0.0, %v226
    %v228 = vpop.f32.mrf.mxu0
    %229 = vmatprep.mubr.f32.mxu0 0.0
    %230 = vmatmul.mubr.f32.gmra.mxu0 %v86
    %v231 = vpop.f32.mrf.mxu0
    %v232 = vadd.f32 0.0, %v231
    %v233 = vpop.f32.mrf.mxu0
    %234 = vmatprep.mubr.f32.mxu0 0.0
    %235 = vmatmul.mubr.f32.gmra.mxu0 %v87
    %v236 = vpop.f32.mrf.mxu0
    %v237 = vadd.f32 0.0, %v236
    %v238 = vpop.f32.mrf.mxu0
    %239 = vmatprep.mubr.f32.mxu0 0.0
    %240 = vmatmul.mubr.f32.gmra.mxu0 %v88
    %v241 = vpop.f32.mrf.mxu0
    %v242 = vadd.f32 0.0, %v241
    %v243 = vpop.f32.mrf.mxu0
    %244 = vdwg.mxu0
    %v245 = vmax.f32 %v172, 0.0
    %v246 = vmax.f32 %v177, 0.0
    %v247 = vmax.f32 %v182, 0.0
    %v248 = vmax.f32 %v187, 0.0
    %v249 = vmax.f32 %v192, 0.0
    %v250 = vmax.f32 %v197, 0.0
    %v251 = vmax.f32 %v202, 0.0
    %v252 = vmax.f32 %v207, 0.0
    %v253 = vmax.f32 %v212, 0.0
    %v254 = vmax.f32 %v217, 0.0
    %v255 = vmax.f32 %v222, 0.0
    %v256 = vmax.f32 %v227, 0.0
    %v257 = vmax.f32 %v232, 0.0
    %v258 = vmax.f32 %v237, 0.0
    %v259 = vmax.f32 %v242, 0.0
    %v260 = vrsqrt.pop %v245
    %v261 = vmul.f32 %v245, %v260
    %vm262 = vcmp.eq.f32.partialorder %v245, inf
    %v263 = vsel %vm262, %v245, %v261
    %vm264 = vcmp.eq.f32.partialorder %v245, 0.0
    %v265 = vand.u32 %v245, 2147483648
    %v266 = vsel %vm264, %v265, %v263
    %v267 = vrsqrt.pop %v246
    %v268 = vmul.f32 %v246, %v267
    %vm269 = vcmp.eq.f32.partialorder %v246, inf
    %v270 = vsel %vm269, %v246, %v268
    %vm271 = vcmp.eq.f32.partialorder %v246, 0.0
    %v272 = vand.u32 %v246, 2147483648
    %v273 = vsel %vm271, %v272, %v270
    %v274 = vrsqrt.pop %v247
    %v275 = vmul.f32 %v247, %v274
    %vm276 = vcmp.eq.f32.partialorder %v247, inf
    %v277 = vsel %vm276, %v247, %v275
    %vm278 = vcmp.eq.f32.partialorder %v247, 0.0
    %v279 = vand.u32 %v247, 2147483648
    %v280 = vsel %vm278, %v279, %v277
    %v281 = vrsqrt.pop %v248
    %v282 = vmul.f32 %v248, %v281
    %vm283 = vcmp.eq.f32.partialorder %v248, inf
    %v284 = vsel %vm283, %v248, %v282
    %vm285 = vcmp.eq.f32.partialorder %v248, 0.0
    %v286 = vand.u32 %v248, 2147483648
    %v287 = vsel %vm285, %v286, %v284
    %v288 = vrsqrt.pop %v249
    %v289 = vmul.f32 %v249, %v288
    %vm290 = vcmp.eq.f32.partialorder %v249, inf
    %v291 = vsel %vm290, %v249, %v289
    %vm292 = vcmp.eq.f32.partialorder %v249, 0.0
    %v293 = vand.u32 %v249, 2147483648
    %v294 = vsel %vm292, %v293, %v291
    %v295 = vrsqrt.pop %v250
    %v296 = vmul.f32 %v250, %v295
    %vm297 = vcmp.eq.f32.partialorder %v250, inf
    %v298 = vsel %vm297, %v250, %v296
    %vm299 = vcmp.eq.f32.partialorder %v250, 0.0
    %v300 = vand.u32 %v250, 2147483648
    %v301 = vsel %vm299, %v300, %v298
    %v302 = vrsqrt.pop %v251
    %v303 = vmul.f32 %v251, %v302
    %vm304 = vcmp.eq.f32.partialorder %v251, inf
    %v305 = vsel %vm304, %v251, %v303
    %vm306 = vcmp.eq.f32.partialorder %v251, 0.0
    %v307 = vand.u32 %v251, 2147483648
    %v308 = vsel %vm306, %v307, %v305
    %v309 = vrsqrt.pop %v252
    %v310 = vmul.f32 %v252, %v309
    %vm311 = vcmp.eq.f32.partialorder %v252, inf
    %v312 = vsel %vm311, %v252, %v310
    %vm313 = vcmp.eq.f32.partialorder %v252, 0.0
    %v314 = vand.u32 %v252, 2147483648
    %v315 = vsel %vm313, %v314, %v312
    %v316 = vrsqrt.pop %v253
    %v317 = vmul.f32 %v253, %v316
    %vm318 = vcmp.eq.f32.partialorder %v253, inf
    %v319 = vsel %vm318, %v253, %v317
    %vm320 = vcmp.eq.f32.partialorder %v253, 0.0
    %v321 = vand.u32 %v253, 2147483648
    %v322 = vsel %vm320, %v321, %v319
    %v323 = vrsqrt.pop %v254
    %v324 = vmul.f32 %v254, %v323
    %vm325 = vcmp.eq.f32.partialorder %v254, inf
    %v326 = vsel %vm325, %v254, %v324
    %vm327 = vcmp.eq.f32.partialorder %v254, 0.0
    %v328 = vand.u32 %v254, 2147483648
    %v329 = vsel %vm327, %v328, %v326
    %v330 = vrsqrt.pop %v255
    %v331 = vmul.f32 %v255, %v330
    %vm332 = vcmp.eq.f32.partialorder %v255, inf
    %v333 = vsel %vm332, %v255, %v331
    %vm334 = vcmp.eq.f32.partialorder %v255, 0.0
    %v335 = vand.u32 %v255, 2147483648
    %v336 = vsel %vm334, %v335, %v333
    %v337 = vrsqrt.pop %v256
    %v338 = vmul.f32 %v256, %v337
    %vm339 = vcmp.eq.f32.partialorder %v256, inf
    %v340 = vsel %vm339, %v256, %v338
    %vm341 = vcmp.eq.f32.partialorder %v256, 0.0
    %v342 = vand.u32 %v256, 2147483648
    %v343 = vsel %vm341, %v342, %v340
    %v344 = vrsqrt.pop %v257
    %v345 = vmul.f32 %v257, %v344
    %vm346 = vcmp.eq.f32.partialorder %v257, inf
    %v347 = vsel %vm346, %v257, %v345
    %vm348 = vcmp.eq.f32.partialorder %v257, 0.0
    %v349 = vand.u32 %v257, 2147483648
    %v350 = vsel %vm348, %v349, %v347
    %v351 = vrsqrt.pop %v258
    %v352 = vmul.f32 %v258, %v351
    %vm353 = vcmp.eq.f32.partialorder %v258, inf
    %v354 = vsel %vm353, %v258, %v352
    %vm355 = vcmp.eq.f32.partialorder %v258, 0.0
    %v356 = vand.u32 %v258, 2147483648
    %v357 = vsel %vm355, %v356, %v354
    %v358 = vrsqrt.pop %v259
    %v359 = vmul.f32 %v259, %v358
    %vm360 = vcmp.eq.f32.partialorder %v259, inf
    %v361 = vsel %vm360, %v259, %v359
    %vm362 = vcmp.eq.f32.partialorder %v259, 0.0
    %v363 = vand.u32 %v259, 2147483648
    %v364 = vsel %vm362, %v363, %v361
    %v365 = vmul.f32 %v266, 0.005
    %v366 = vmul.f32 %v273, 0.005
    %v367 = vmul.f32 %v280, 0.005
    %v368 = vmul.f32 %v287, 0.005
    %v369 = vmul.f32 %v294, 0.005
    %v370 = vmul.f32 %v301, 0.005
    %v371 = vmul.f32 %v308, 0.005
    %v372 = vmul.f32 %v315, 0.005
    %v373 = vmul.f32 %v322, 0.005
    %v374 = vmul.f32 %v329, 0.005
    %v375 = vmul.f32 %v336, 0.005
    %v376 = vmul.f32 %v343, 0.005
    %v377 = vmul.f32 %v350, 0.005
    %v378 = vmul.f32 %v357, 0.005
    %v379 = vmul.f32 %v364, 0.005
    %v380 = vmul.f32 %v365, 1.442695
    %v381 = vpow.pop %v380
    %v382 = vmul.f32 %v366, 1.442695
    %v383 = vpow.pop %v382
    %v384 = vmul.f32 %v367, 1.442695
    %v385 = vpow.pop %v384
    %v386 = vmul.f32 %v368, 1.442695
    %v387 = vpow.pop %v386
    %v388 = vmul.f32 %v369, 1.442695
    %v389 = vpow.pop %v388
    %v390 = vmul.f32 %v370, 1.442695
    %v391 = vpow.pop %v390
    %v392 = vmul.f32 %v371, 1.442695
    %v393 = vpow.pop %v392
    %v394 = vmul.f32 %v372, 1.442695
    %v395 = vpow.pop %v394
    %v396 = vmul.f32 %v373, 1.442695
    %v397 = vpow.pop %v396
    %v398 = vmul.f32 %v374, 1.442695
    %v399 = vpow.pop %v398
    %v400 = vmul.f32 %v375, 1.442695
    %v401 = vpow.pop %v400
    %v402 = vmul.f32 %v376, 1.442695
    %v403 = vpow.pop %v402
    %v404 = vmul.f32 %v377, 1.442695
    %v405 = vpow.pop %v404
    %v406 = vmul.f32 %v378, 1.442695
    %v407 = vpow.pop %v406
    %v408 = vmul.f32 %v379, 1.442695
    %v409 = vpow.pop %v408
    %v410 = vadd.f32 %v381, %v383
    %v411 = vadd.f32 %v410, %v385
    %v412 = vadd.f32 %v411, %v387
    %v413 = vadd.f32 %v412, %v389
    %v414 = vadd.f32 %v413, %v391
    %v415 = vadd.f32 %v414, %v393
    %v416 = vadd.f32 %v415, %v395
    %v417 = vadd.f32 %v416, %v397
    %v418 = vadd.f32 %v417, %v399
    %v419 = vadd.f32 %v418, %v401
    %v420 = vadd.f32 %v419, %v403
    %v421 = vadd.f32 %v420, %v405
    %v422 = vadd.f32 %v421, %v407
    %v423 = vadd.f32 %v422, %v409
    %v424 = vld [vmem:[#allocation2] sm:$0xf]
    %v425 = vld [vmem:[#allocation2 + $0x4] sm:$0xf]
    %v426 = vld [vmem:[#allocation2 + $0x8] sm:$0xf]
    %v427 = vld [vmem:[#allocation2 + $0xc] sm:$0xf]
    %v428 = vld [vmem:[#allocation2 + $0x10] sm:$0xf]
    %v429 = vld [vmem:[#allocation2 + $0x14] sm:$0xf]
    %v430 = vld [vmem:[#allocation2 + $0x18] sm:$0xf]
    %v431 = vld [vmem:[#allocation2 + $0x1c] sm:$0xf]
    %v432 = vld [vmem:[#allocation2 + $0x20] sm:$0xf]
    %v433 = vld [vmem:[#allocation2 + $0x24] sm:$0xf]
    %v434 = vld [vmem:[#allocation2 + $0x28] sm:$0xf]
    %v435 = vld [vmem:[#allocation2 + $0x2c] sm:$0xf]
    %v436 = vld [vmem:[#allocation2 + $0x30] sm:$0xf]
    %v437 = vld [vmem:[#allocation2 + $0x34] sm:$0xf]
    %v438 = vld [vmem:[#allocation2 + $0x38] sm:$0xf]
    %v439 = vld [vmem:[#allocation7] sm:$0xf]
    %v440 = vld [vmem:[#allocation7 + $0x4] sm:$0xf]
    %v441 = vld [vmem:[#allocation7 + $0x8] sm:$0xf]
    %v442 = vld [vmem:[#allocation7 + $0xc] sm:$0xf]
    %v443 = vld [vmem:[#allocation7 + $0x10] sm:$0xf]
    %v444 = vld [vmem:[#allocation7 + $0x14] sm:$0xf]
    %v445 = vld [vmem:[#allocation7 + $0x18] sm:$0xf]
    %v446 = vld [vmem:[#allocation7 + $0x1c] sm:$0xf]
    %v447 = vld [vmem:[#allocation7 + $0x20] sm:$0xf]
    %v448 = vld [vmem:[#allocation7 + $0x24] sm:$0xf]
    %v449 = vld [vmem:[#allocation7 + $0x28] sm:$0xf]
    %v450 = vld [vmem:[#allocation7 + $0x2c] sm:$0xf]
    %v451 = vld [vmem:[#allocation7 + $0x30] sm:$0xf]
    %v452 = vld [vmem:[#allocation7 + $0x34] sm:$0xf]
    %v453 = vld [vmem:[#allocation7 + $0x38] sm:$0xf]
    %v454 = vld [vmem:[#allocation7 + $0x3c] sm:$0xf]
    %v455 = vld [vmem:[#allocation7 + $0x40] sm:$0xf]
    %v456 = vld [vmem:[#allocation7 + $0x44] sm:$0xf]
    %v457 = vld [vmem:[#allocation7 + $0x48] sm:$0xf]
    %v458 = vld [vmem:[#allocation7 + $0x4c] sm:$0xf]
    %v459 = vld [vmem:[#allocation7 + $0x50] sm:$0xf]
    %v460 = vld [vmem:[#allocation7 + $0x54] sm:$0xf]
    %v461 = vld [vmem:[#allocation7 + $0x58] sm:$0xf]
    %v462 = vld [vmem:[#allocation7 + $0x5c] sm:$0xf]
    %v463 = vld [vmem:[#allocation7 + $0x60] sm:$0xf]
    %v464 = vld [vmem:[#allocation7 + $0x64] sm:$0xf]
    %v465 = vld [vmem:[#allocation7 + $0x68] sm:$0xf]
    %v466 = vld [vmem:[#allocation7 + $0x6c] sm:$0xf]
    %v467 = vld [vmem:[#allocation7 + $0x70] sm:$0xf]
    %v468 = vld [vmem:[#allocation7 + $0x74] sm:$0xf]
    %v469 = vld [vmem:[#allocation7 + $0x78] sm:$0xf]
    %v470 = vld [vmem:[#allocation7 + $0x7c] sm:$0xf]
    %v471 = vld [vmem:[#allocation7 + $0x80] sm:$0xf]
    %v472 = vld [vmem:[#allocation7 + $0x84] sm:$0xf]
    %v473 = vld [vmem:[#allocation7 + $0x88] sm:$0xf]
    %v474 = vld [vmem:[#allocation7 + $0x8c] sm:$0xf]
    %v475 = vld [vmem:[#allocation7 + $0x90] sm:$0xf]
    %v476 = vld [vmem:[#allocation7 + $0x94] sm:$0xf]
    %v477 = vld [vmem:[#allocation7 + $0x98] sm:$0xf]
    %v478 = vld [vmem:[#allocation7 + $0x9c] sm:$0xf]
    %v479 = vld [vmem:[#allocation7 + $0xa0] sm:$0xf]
    %v480 = vld [vmem:[#allocation7 + $0xa4] sm:$0xf]
    %v481 = vld [vmem:[#allocation7 + $0xa8] sm:$0xf]
    %v482 = vld [vmem:[#allocation7 + $0xac] sm:$0xf]
    %v483 = vld [vmem:[#allocation7 + $0xb0] sm:$0xf]
    %v484 = vld [vmem:[#allocation7 + $0xb4] sm:$0xf]
    %v485 = vld [vmem:[#allocation7 + $0xb8] sm:$0xf]
    %v486 = vld [vmem:[#allocation7 + $0xbc] sm:$0xf]
    %v487 = vld [vmem:[#allocation7 + $0xc0] sm:$0xf]
    %v488 = vld [vmem:[#allocation7 + $0xc4] sm:$0xf]
    %v489 = vld [vmem:[#allocation7 + $0xc8] sm:$0xf]
    %v490 = vld [vmem:[#allocation7 + $0xcc] sm:$0xf]
    %v491 = vld [vmem:[#allocation7 + $0xd0] sm:$0xf]
    %v492 = vld [vmem:[#allocation7 + $0xd4] sm:$0xf]
    %v493 = vld [vmem:[#allocation7 + $0xd8] sm:$0xf]
    %v494 = vld [vmem:[#allocation7 + $0xdc] sm:$0xf]
    %v495 = vld [vmem:[#allocation7 + $0xe0] sm:$0xf]
    %v496 = vld [vmem:[#allocation7 + $0xe4] sm:$0xf]
    %v497 = vld [vmem:[#allocation7 + $0xe8] sm:$0xf]
    %v498 = vld [vmem:[#allocation7 + $0xec] sm:$0xf]
    %v499 = vld [vmem:[#allocation7 + $0xf0] sm:$0xf]
    %v500 = vld [vmem:[#allocation7 + $0xf4] sm:$0xf]
    %v501 = vld [vmem:[#allocation7 + $0xf8] sm:$0xf]
    %v502 = vld [vmem:[#allocation7 + $0xfc] sm:$0xf]
    %v503 = vld [vmem:[#allocation7 + $0x100] sm:$0xf]
    %v504 = vld [vmem:[#allocation7 + $0x104] sm:$0xf]
    %v505 = vld [vmem:[#allocation7 + $0x108] sm:$0xf]
    %v506 = vld [vmem:[#allocation7 + $0x10c] sm:$0xf]
    %v507 = vld [vmem:[#allocation7 + $0x110] sm:$0xf]
    %v508 = vld [vmem:[#allocation7 + $0x114] sm:$0xf]
    %v509 = vld [vmem:[#allocation7 + $0x118] sm:$0xf]
    %v510 = vld [vmem:[#allocation7 + $0x11c] sm:$0xf]
    %v511 = vld [vmem:[#allocation7 + $0x120] sm:$0xf]
    %v512 = vld [vmem:[#allocation7 + $0x124] sm:$0xf]
    %v513 = vld [vmem:[#allocation7 + $0x128] sm:$0xf]
    %v514 = vld [vmem:[#allocation7 + $0x12c] sm:$0xf]
    %v515 = vld [vmem:[#allocation7 + $0x130] sm:$0xf]
    %v516 = vld [vmem:[#allocation7 + $0x134] sm:$0xf]
    %v517 = vld [vmem:[#allocation7 + $0x138] sm:$0xf]
    %v518 = vld [vmem:[#allocation7 + $0x13c] sm:$0xf]
    %v519 = vld [vmem:[#allocation7 + $0x140] sm:$0xf]
    %v520 = vld [vmem:[#allocation7 + $0x144] sm:$0xf]
    %v521 = vld [vmem:[#allocation7 + $0x148] sm:$0xf]
    %v522 = vld [vmem:[#allocation7 + $0x14c] sm:$0xf]
    %v523 = vld [vmem:[#allocation7 + $0x150] sm:$0xf]
    %v524 = vld [vmem:[#allocation7 + $0x154] sm:$0xf]
    %v525 = vld [vmem:[#allocation7 + $0x158] sm:$0xf]
    %v526 = vld [vmem:[#allocation7 + $0x15c] sm:$0xf]
    %v527 = vld [vmem:[#allocation7 + $0x160] sm:$0xf]
    %v528 = vld [vmem:[#allocation7 + $0x164] sm:$0xf]
    %v529 = vld [vmem:[#allocation7 + $0x168] sm:$0xf]
    %v530 = vld [vmem:[#allocation7 + $0x16c] sm:$0xf]
    %v531 = vld [vmem:[#allocation7 + $0x170] sm:$0xf]
    %v532 = vld [vmem:[#allocation7 + $0x174] sm:$0xf]
    %v533 = vld [vmem:[#allocation7 + $0x178] sm:$0xf]
    %v534 = vld [vmem:[#allocation7 + $0x17c] sm:$0xf]
    %v535 = vld [vmem:[#allocation7 + $0x180] sm:$0xf]
    %v536 = vld [vmem:[#allocation7 + $0x184] sm:$0xf]
    %v537 = vld [vmem:[#allocation7 + $0x188] sm:$0xf]
    %v538 = vld [vmem:[#allocation7 + $0x18c] sm:$0xf]
    %v539 = vld [vmem:[#allocation7 + $0x190] sm:$0xf]
    %v540 = vld [vmem:[#allocation7 + $0x194] sm:$0xf]
    %v541 = vld [vmem:[#allocation7 + $0x198] sm:$0xf]
    %v542 = vld [vmem:[#allocation7 + $0x19c] sm:$0xf]
    %v543 = vld [vmem:[#allocation7 + $0x1a0] sm:$0xf]
    %v544 = vld [vmem:[#allocation7 + $0x1a4] sm:$0xf]
    %v545 = vld [vmem:[#allocation7 + $0x1a8] sm:$0xf]
    %v546 = vld [vmem:[#allocation7 + $0x1ac] sm:$0xf]
    %v547 = vld [vmem:[#allocation7 + $0x1b0] sm:$0xf]
    %v548 = vld [vmem:[#allocation7 + $0x1b4] sm:$0xf]
    %v549 = vld [vmem:[#allocation7 + $0x1b8] sm:$0xf]
    %v550 = vld [vmem:[#allocation7 + $0x1bc] sm:$0xf]
    %v551 = vld [vmem:[#allocation7 + $0x1c0] sm:$0xf]
    %v552 = vld [vmem:[#allocation7 + $0x1c4] sm:$0xf]
    %v553 = vld [vmem:[#allocation7 + $0x1c8] sm:$0xf]
    %v554 = vld [vmem:[#allocation7 + $0x1cc] sm:$0xf]
    %v555 = vld [vmem:[#allocation7 + $0x1d0] sm:$0xf]
    %v556 = vld [vmem:[#allocation7 + $0x1d4] sm:$0xf]
    %v557 = vld [vmem:[#allocation7 + $0x1d8] sm:$0xf]
    %v558 = vld [vmem:[#allocation7 + $0x1dc] sm:$0xf]
    %v559 = vld [vmem:[#allocation7 + $0x1e0] sm:$0xf]
    %v560 = vld [vmem:[#allocation7 + $0x1e4] sm:$0xf]
    %v561 = vld [vmem:[#allocation7 + $0x1e8] sm:$0xf]
    %v562 = vld [vmem:[#allocation7 + $0x1ec] sm:$0xf]
    %v563 = vld [vmem:[#allocation7 + $0x1f0] sm:$0xf]
    %v564 = vld [vmem:[#allocation7 + $0x1f4] sm:$0xf]
    %v565 = vld [vmem:[#allocation7 + $0x1f8] sm:$0xf]
    %v566 = vld [vmem:[#allocation7 + $0x1fc] sm:$0xf]
    %v567 = vld [vmem:[#allocation7 + $0x200] sm:$0xf]
    %v568 = vld [vmem:[#allocation7 + $0x204] sm:$0xf]
    %v569 = vld [vmem:[#allocation7 + $0x208] sm:$0xf]
    %v570 = vld [vmem:[#allocation7 + $0x20c] sm:$0xf]
    %v571 = vld [vmem:[#allocation7 + $0x210] sm:$0xf]
    %v572 = vld [vmem:[#allocation7 + $0x214] sm:$0xf]
    %v573 = vld [vmem:[#allocation7 + $0x218] sm:$0xf]
    %v574 = vld [vmem:[#allocation7 + $0x21c] sm:$0xf]
    %v575 = vld [vmem:[#allocation7 + $0x220] sm:$0xf]
    %v576 = vld [vmem:[#allocation7 + $0x224] sm:$0xf]
    %v577 = vld [vmem:[#allocation7 + $0x228] sm:$0xf]
    %v578 = vld [vmem:[#allocation7 + $0x22c] sm:$0xf]
    %v579 = vld [vmem:[#allocation7 + $0x230] sm:$0xf]
    %v580 = vld [vmem:[#allocation7 + $0x234] sm:$0xf]
    %v581 = vld [vmem:[#allocation7 + $0x238] sm:$0xf]
    %v582 = vld [vmem:[#allocation7 + $0x23c] sm:$0xf]
    %v583 = vld [vmem:[#allocation7 + $0x240] sm:$0xf]
    %v584 = vld [vmem:[#allocation7 + $0x244] sm:$0xf]
    %v585 = vld [vmem:[#allocation7 + $0x248] sm:$0xf]
    %v586 = vld [vmem:[#allocation7 + $0x24c] sm:$0xf]
    %v587 = vld [vmem:[#allocation7 + $0x250] sm:$0xf]
    %v588 = vld [vmem:[#allocation7 + $0x254] sm:$0xf]
    %v589 = vld [vmem:[#allocation7 + $0x258] sm:$0xf]
    %v590 = vld [vmem:[#allocation7 + $0x25c] sm:$0xf]
    %v591 = vld [vmem:[#allocation7 + $0x260] sm:$0xf]
    %v592 = vld [vmem:[#allocation7 + $0x264] sm:$0xf]
    %v593 = vld [vmem:[#allocation7 + $0x268] sm:$0xf]
    %v594 = vld [vmem:[#allocation7 + $0x26c] sm:$0xf]
    %v595 = vld [vmem:[#allocation7 + $0x270] sm:$0xf]
    %v596 = vld [vmem:[#allocation7 + $0x274] sm:$0xf]
    %v597 = vld [vmem:[#allocation7 + $0x278] sm:$0xf]
    %v598 = vld [vmem:[#allocation7 + $0x27c] sm:$0xf]
    %v599 = vld [vmem:[#allocation7 + $0x280] sm:$0xf]
    %v600 = vld [vmem:[#allocation7 + $0x284] sm:$0xf]
    %v601 = vld [vmem:[#allocation7 + $0x288] sm:$0xf]
    %v602 = vld [vmem:[#allocation7 + $0x28c] sm:$0xf]
    %v603 = vld [vmem:[#allocation7 + $0x290] sm:$0xf]
    %v604 = vld [vmem:[#allocation7 + $0x294] sm:$0xf]
    %v605 = vld [vmem:[#allocation7 + $0x298] sm:$0xf]
    %v606 = vld [vmem:[#allocation7 + $0x29c] sm:$0xf]
    %v607 = vld [vmem:[#allocation7 + $0x2a0] sm:$0xf]
    %v608 = vld [vmem:[#allocation7 + $0x2a4] sm:$0xf]
    %v609 = vld [vmem:[#allocation7 + $0x2a8] sm:$0xf]
    %v610 = vld [vmem:[#allocation7 + $0x2ac] sm:$0xf]
    %v611 = vld [vmem:[#allocation7 + $0x2b0] sm:$0xf]
    %v612 = vld [vmem:[#allocation7 + $0x2b4] sm:$0xf]
    %v613 = vld [vmem:[#allocation7 + $0x2b8] sm:$0xf]
    %v614 = vld [vmem:[#allocation7 + $0x2bc] sm:$0xf]
    %v615 = vld [vmem:[#allocation7 + $0x2c0] sm:$0xf]
    %v616 = vld [vmem:[#allocation7 + $0x2c4] sm:$0xf]
    %v617 = vld [vmem:[#allocation7 + $0x2c8] sm:$0xf]
    %v618 = vld [vmem:[#allocation7 + $0x2cc] sm:$0xf]
    %v619 = vld [vmem:[#allocation7 + $0x2d0] sm:$0xf]
    %v620 = vld [vmem:[#allocation7 + $0x2d4] sm:$0xf]
    %v621 = vld [vmem:[#allocation7 + $0x2d8] sm:$0xf]
    %v622 = vld [vmem:[#allocation7 + $0x2dc] sm:$0xf]
    %v623 = vld [vmem:[#allocation7 + $0x2e0] sm:$0xf]
    %v624 = vld [vmem:[#allocation7 + $0x2e4] sm:$0xf]
    %v625 = vld [vmem:[#allocation7 + $0x2e8] sm:$0xf]
    %v626 = vld [vmem:[#allocation7 + $0x2ec] sm:$0xf]
    %v627 = vld [vmem:[#allocation7 + $0x2f0] sm:$0xf]
    %v628 = vld [vmem:[#allocation7 + $0x2f4] sm:$0xf]
    %v629 = vld [vmem:[#allocation7 + $0x2f8] sm:$0xf]
    %v630 = vld [vmem:[#allocation7 + $0x2fc] sm:$0xf]
    %v631 = vld [vmem:[#allocation7 + $0x300] sm:$0xf]
    %v632 = vld [vmem:[#allocation7 + $0x304] sm:$0xf]
    %v633 = vld [vmem:[#allocation7 + $0x308] sm:$0xf]
    %v634 = vld [vmem:[#allocation7 + $0x30c] sm:$0xf]
    %v635 = vld [vmem:[#allocation7 + $0x310] sm:$0xf]
    %v636 = vld [vmem:[#allocation7 + $0x314] sm:$0xf]
    %v637 = vld [vmem:[#allocation7 + $0x318] sm:$0xf]
    %v638 = vld [vmem:[#allocation7 + $0x31c] sm:$0xf]
    %v639 = vld [vmem:[#allocation7 + $0x320] sm:$0xf]
    %v640 = vld [vmem:[#allocation7 + $0x324] sm:$0xf]
    %v641 = vld [vmem:[#allocation7 + $0x328] sm:$0xf]
    %v642 = vld [vmem:[#allocation7 + $0x32c] sm:$0xf]
    %v643 = vld [vmem:[#allocation7 + $0x330] sm:$0xf]
    %v644 = vld [vmem:[#allocation7 + $0x334] sm:$0xf]
    %v645 = vld [vmem:[#allocation7 + $0x338] sm:$0xf]
    %v646 = vld [vmem:[#allocation7 + $0x33c] sm:$0xf]
    %v647 = vld [vmem:[#allocation7 + $0x340] sm:$0xf]
    %v648 = vld [vmem:[#allocation7 + $0x344] sm:$0xf]
    %v649 = vld [vmem:[#allocation7 + $0x348] sm:$0xf]
    %v650 = vld [vmem:[#allocation7 + $0x34c] sm:$0xf]
    %v651 = vld [vmem:[#allocation7 + $0x350] sm:$0xf]
    %v652 = vld [vmem:[#allocation7 + $0x354] sm:$0xf]
    %v653 = vld [vmem:[#allocation7 + $0x358] sm:$0xf]
    %v654 = vld [vmem:[#allocation7 + $0x35c] sm:$0xf]
    %v655 = vld [vmem:[#allocation7 + $0x360] sm:$0xf]
    %v656 = vld [vmem:[#allocation7 + $0x364] sm:$0xf]
    %v657 = vld [vmem:[#allocation7 + $0x368] sm:$0xf]
    %v658 = vld [vmem:[#allocation7 + $0x36c] sm:$0xf]
    %v659 = vld [vmem:[#allocation7 + $0x370] sm:$0xf]
    %v660 = vld [vmem:[#allocation7 + $0x374] sm:$0xf]
    %v661 = vld [vmem:[#allocation7 + $0x378] sm:$0xf]
    %v662 = vld [vmem:[#allocation7 + $0x37c] sm:$0xf]
    %v663 = vld [vmem:[#allocation7 + $0x380] sm:$0xf]
    %v664 = vld [vmem:[#allocation7 + $0x384] sm:$0xf]
    %v665 = vld [vmem:[#allocation7 + $0x388] sm:$0xf]
    %v666 = vld [vmem:[#allocation7 + $0x38c] sm:$0xf]
    %v667 = vld [vmem:[#allocation7 + $0x390] sm:$0xf]
    %v668 = vld [vmem:[#allocation7 + $0x394] sm:$0xf]
    %v669 = vld [vmem:[#allocation7 + $0x398] sm:$0xf]
    %v670 = vld [vmem:[#allocation7 + $0x39c] sm:$0xf]
    %v671 = vld [vmem:[#allocation7 + $0x3a0] sm:$0xf]
    %v672 = vld [vmem:[#allocation7 + $0x3a4] sm:$0xf]
    %v673 = vld [vmem:[#allocation7 + $0x3a8] sm:$0xf]
    %v674 = vld [vmem:[#allocation7 + $0x3ac] sm:$0xf]
    %v675 = vld [vmem:[#allocation7 + $0x3b0] sm:$0xf]
    %v676 = vld [vmem:[#allocation7 + $0x3b4] sm:$0xf]
    %v677 = vld [vmem:[#allocation7 + $0x3b8] sm:$0xf]
    %v678 = vld [vmem:[#allocation7 + $0x3bc] sm:$0xf]
    %v695 = vunpack.c.l.b16 %v439
    %v696 = vunpack.c.l.b16 %v440
    %v697 = vunpack.c.l.b16 %v441
    %v698 = vunpack.c.l.b16 %v442
    %v699 = vunpack.c.l.b16 %v443
    %v700 = vunpack.c.l.b16 %v444
    %v701 = vunpack.c.l.b16 %v445
    %v702 = vunpack.c.l.b16 %v446
    %v703 = vunpack.c.l.b16 %v447
    %v704 = vunpack.c.l.b16 %v448
    %v705 = vunpack.c.l.b16 %v449
    %v706 = vunpack.c.l.b16 %v450
    %v707 = vunpack.c.l.b16 %v451
    %v708 = vunpack.c.l.b16 %v452
    %v709 = vunpack.c.l.b16 %v453
    %v710 = vunpack.c.l.b16 %v454
    %v711 = vpack.c.b16 %v696, %v695
    %v712 = vpack.c.b16 %v698, %v697
    %v713 = vpack.c.b16 %v700, %v699
    %v714 = vpack.c.b16 %v702, %v701
    %v715 = vpack.c.b16 %v704, %v703
    %v716 = vpack.c.b16 %v706, %v705
    %v717 = vpack.c.b16 %v708, %v707
    %v718 = vpack.c.b16 %v710, %v709
    %727 = vmatprep.subr.bf16.mxu0 0
    %728 = vmatpush1.bf16.xpose.msra.mxu0 %v718
    %729 = vmatprep.subr.bf16.mxu0 0
    %730 = vmatpush1.bf16.xpose.msra.mxu0 %v717
    %731 = vmatprep.subr.bf16.mxu0 0
    %732 = vmatpush1.bf16.xpose.msra.mxu0 %v716
    %733 = vmatprep.subr.bf16.mxu0 0
    %734 = vmatpush1.bf16.xpose.msra.mxu0 %v715
    %735 = vmatprep.subr.bf16.mxu0 0
    %736 = vmatpush1.bf16.xpose.msra.mxu0 %v714
    %737 = vmatprep.subr.bf16.mxu0 0
    %738 = vmatpush1.bf16.xpose.msra.mxu0 %v713
    %739 = vmatprep.subr.bf16.mxu0 0
    %740 = vmatpush1.bf16.xpose.msra.mxu0 %v712
    %741 = vmatprep.subr.bf16.mxu0 0
    %742 = vmatpush1.bf16.xpose.msra.mxu0 %v711
    %743 = vmatprep.subr.bf16.mxu0 0
    %744 = vmatpush2.bf16.xpose.msra.mxu0 0
    %745 = vmatprep.subr.bf16.mxu0 0
    %746 = vmatpush2.bf16.xpose.msra.mxu0 0
    %747 = vmatprep.subr.bf16.mxu0 0
    %748 = vmatpush2.bf16.xpose.msra.mxu0 0
    %749 = vmatprep.subr.bf16.mxu0 0
    %750 = vmatpush2.bf16.xpose.msra.mxu0 0
    %751 = vmatprep.subr.bf16.mxu0 0
    %752 = vmatpush2.bf16.xpose.msra.mxu0 0
    %753 = vmatprep.subr.bf16.mxu0 0
    %754 = vmatpush2.bf16.xpose.msra.mxu0 0
    %755 = vmatprep.subr.bf16.mxu0 0
    %756 = vmatpush2.bf16.xpose.msra.mxu0 0
    %757 = vmatprep.subr.bf16.mxu0 0
    %758 = vmatpush2.bf16.xpose.msra.mxu0 0
    %759 = vmatprep.mubr.bf16.mxu0 0
    %760 = vmatmul.mubr.bf16.gmra.mxu0 %v424
    %v761 = vpop.f32.mrf.mxu0
    %v762 = vadd.f32 0.0, %v761
    %v763 = vpop.f32.mrf.mxu0
    %v764 = vpop.f32.mrf.mxu0
    %v765 = vpop.f32.mrf.mxu0
    %766 = vdwg.mxu0
    %v783 = vunpack.c.l.b16 %v455
    %v784 = vunpack.c.l.b16 %v456
    %v785 = vunpack.c.l.b16 %v457
    %v786 = vunpack.c.l.b16 %v458
    %v787 = vunpack.c.l.b16 %v459
    %v788 = vunpack.c.l.b16 %v460
    %v789 = vunpack.c.l.b16 %v461
    %v790 = vunpack.c.l.b16 %v462
    %v791 = vunpack.c.l.b16 %v463
    %v792 = vunpack.c.l.b16 %v464
    %v793 = vunpack.c.l.b16 %v465
    %v794 = vunpack.c.l.b16 %v466
    %v795 = vunpack.c.l.b16 %v467
    %v796 = vunpack.c.l.b16 %v468
    %v797 = vunpack.c.l.b16 %v469
    %v798 = vunpack.c.l.b16 %v470
    %v799 = vpack.c.b16 %v784, %v783
    %v800 = vpack.c.b16 %v786, %v785
    %v801 = vpack.c.b16 %v788, %v787
    %v802 = vpack.c.b16 %v790, %v789
    %v803 = vpack.c.b16 %v792, %v791
    %v804 = vpack.c.b16 %v794, %v793
    %v805 = vpack.c.b16 %v796, %v795
    %v806 = vpack.c.b16 %v798, %v797
    %815 = vmatprep.subr.bf16.mxu0 0
    %816 = vmatpush1.bf16.xpose.msra.mxu0 %v806
    %817 = vmatprep.subr.bf16.mxu0 0
    %818 = vmatpush1.bf16.xpose.msra.mxu0 %v805
    %819 = vmatprep.subr.bf16.mxu0 0
    %820 = vmatpush1.bf16.xpose.msra.mxu0 %v804
    %821 = vmatprep.subr.bf16.mxu0 0
    %822 = vmatpush1.bf16.xpose.msra.mxu0 %v803
    %823 = vmatprep.subr.bf16.mxu0 0
    %824 = vmatpush1.bf16.xpose.msra.mxu0 %v802
    %825 = vmatprep.subr.bf16.mxu0 0
    %826 = vmatpush1.bf16.xpose.msra.mxu0 %v801
    %827 = vmatprep.subr.bf16.mxu0 0
    %828 = vmatpush1.bf16.xpose.msra.mxu0 %v800
    %829 = vmatprep.subr.bf16.mxu0 0
    %830 = vmatpush1.bf16.xpose.msra.mxu0 %v799
    %831 = vmatprep.subr.bf16.mxu0 0
    %832 = vmatpush2.bf16.xpose.msra.mxu0 0
    %833 = vmatprep.subr.bf16.mxu0 0
    %834 = vmatpush2.bf16.xpose.msra.mxu0 0
    %835 = vmatprep.subr.bf16.mxu0 0
    %836 = vmatpush2.bf16.xpose.msra.mxu0 0
    %837 = vmatprep.subr.bf16.mxu0 0
    %838 = vmatpush2.bf16.xpose.msra.mxu0 0
    %839 = vmatprep.subr.bf16.mxu0 0
    %840 = vmatpush2.bf16.xpose.msra.mxu0 0
    %841 = vmatprep.subr.bf16.mxu0 0
    %842 = vmatpush2.bf16.xpose.msra.mxu0 0
    %843 = vmatprep.subr.bf16.mxu0 0
    %844 = vmatpush2.bf16.xpose.msra.mxu0 0
    %845 = vmatprep.subr.bf16.mxu0 0
    %846 = vmatpush2.bf16.xpose.msra.mxu0 0
    %847 = vmatprep.mubr.bf16.mxu0 0
    %848 = vmatmul.mubr.bf16.gmra.mxu0 %v425
    %v849 = vpop.f32.mrf.mxu0
    %v850 = vadd.f32 0.0, %v849
    %v851 = vpop.f32.mrf.mxu0
    %v852 = vpop.f32.mrf.mxu0
    %v853 = vpop.f32.mrf.mxu0
    %854 = vdwg.mxu0
    %v871 = vunpack.c.l.b16 %v471
    %v872 = vunpack.c.l.b16 %v472
    %v873 = vunpack.c.l.b16 %v473
    %v874 = vunpack.c.l.b16 %v474
    %v875 = vunpack.c.l.b16 %v475
    %v876 = vunpack.c.l.b16 %v476
    %v877 = vunpack.c.l.b16 %v477
    %v878 = vunpack.c.l.b16 %v478
    %v879 = vunpack.c.l.b16 %v479
    %v880 = vunpack.c.l.b16 %v480
    %v881 = vunpack.c.l.b16 %v481
    %v882 = vunpack.c.l.b16 %v482
    %v883 = vunpack.c.l.b16 %v483
    %v884 = vunpack.c.l.b16 %v484
    %v885 = vunpack.c.l.b16 %v485
    %v886 = vunpack.c.l.b16 %v486
    %v887 = vpack.c.b16 %v872, %v871
    %v888 = vpack.c.b16 %v874, %v873
    %v889 = vpack.c.b16 %v876, %v875
    %v890 = vpack.c.b16 %v878, %v877
    %v891 = vpack.c.b16 %v880, %v879
    %v892 = vpack.c.b16 %v882, %v881
    %v893 = vpack.c.b16 %v884, %v883
    %v894 = vpack.c.b16 %v886, %v885
    %903 = vmatprep.subr.bf16.mxu0 0
    %904 = vmatpush1.bf16.xpose.msra.mxu0 %v894
    %905 = vmatprep.subr.bf16.mxu0 0
    %906 = vmatpush1.bf16.xpose.msra.mxu0 %v893
    %907 = vmatprep.subr.bf16.mxu0 0
    %908 = vmatpush1.bf16.xpose.msra.mxu0 %v892
    %909 = vmatprep.subr.bf16.mxu0 0
    %910 = vmatpush1.bf16.xpose.msra.mxu0 %v891
    %911 = vmatprep.subr.bf16.mxu0 0
    %912 = vmatpush1.bf16.xpose.msra.mxu0 %v890
    %913 = vmatprep.subr.bf16.mxu0 0
    %914 = vmatpush1.bf16.xpose.msra.mxu0 %v889
    %915 = vmatprep.subr.bf16.mxu0 0
    %916 = vmatpush1.bf16.xpose.msra.mxu0 %v888
    %917 = vmatprep.subr.bf16.mxu0 0
    %918 = vmatpush1.bf16.xpose.msra.mxu0 %v887
    %919 = vmatprep.subr.bf16.mxu0 0
    %920 = vmatpush2.bf16.xpose.msra.mxu0 0
    %921 = vmatprep.subr.bf16.mxu0 0
    %922 = vmatpush2.bf16.xpose.msra.mxu0 0
    %923 = vmatprep.subr.bf16.mxu0 0
    %924 = vmatpush2.bf16.xpose.msra.mxu0 0
    %925 = vmatprep.subr.bf16.mxu0 0
    %926 = vmatpush2.bf16.xpose.msra.mxu0 0
    %927 = vmatprep.subr.bf16.mxu0 0
    %928 = vmatpush2.bf16.xpose.msra.mxu0 0
    %929 = vmatprep.subr.bf16.mxu0 0
    %930 = vmatpush2.bf16.xpose.msra.mxu0 0
    %931 = vmatprep.subr.bf16.mxu0 0
    %932 = vmatpush2.bf16.xpose.msra.mxu0 0
    %933 = vmatprep.subr.bf16.mxu0 0
    %934 = vmatpush2.bf16.xpose.msra.mxu0 0
    %935 = vmatprep.mubr.bf16.mxu0 0
    %936 = vmatmul.mubr.bf16.gmra.mxu0 %v426
    %v937 = vpop.f32.mrf.mxu0
    %v938 = vadd.f32 0.0, %v937
    %v939 = vpop.f32.mrf.mxu0
    %v940 = vpop.f32.mrf.mxu0
    %v941 = vpop.f32.mrf.mxu0
    %942 = vdwg.mxu0
    %v959 = vunpack.c.l.b16 %v487
    %v960 = vunpack.c.l.b16 %v488
    %v961 = vunpack.c.l.b16 %v489
    %v962 = vunpack.c.l.b16 %v490
    %v963 = vunpack.c.l.b16 %v491
    %v964 = vunpack.c.l.b16 %v492
    %v965 = vunpack.c.l.b16 %v493
    %v966 = vunpack.c.l.b16 %v494
    %v967 = vunpack.c.l.b16 %v495
    %v968 = vunpack.c.l.b16 %v496
    %v969 = vunpack.c.l.b16 %v497
    %v970 = vunpack.c.l.b16 %v498
    %v971 = vunpack.c.l.b16 %v499
    %v972 = vunpack.c.l.b16 %v500
    %v973 = vunpack.c.l.b16 %v501
    %v974 = vunpack.c.l.b16 %v502
    %v975 = vpack.c.b16 %v960, %v959
    %v976 = vpack.c.b16 %v962, %v961
    %v977 = vpack.c.b16 %v964, %v963
    %v978 = vpack.c.b16 %v966, %v965
    %v979 = vpack.c.b16 %v968, %v967
    %v980 = vpack.c.b16 %v970, %v969
    %v981 = vpack.c.b16 %v972, %v971
    %v982 = vpack.c.b16 %v974, %v973
    %991 = vmatprep.subr.bf16.mxu0 0
    %992 = vmatpush1.bf16.xpose.msra.mxu0 %v982
    %993 = vmatprep.subr.bf16.mxu0 0
    %994 = vmatpush1.bf16.xpose.msra.mxu0 %v981
    %995 = vmatprep.subr.bf16.mxu0 0
    %996 = vmatpush1.bf16.xpose.msra.mxu0 %v980
    %997 = vmatprep.subr.bf16.mxu0 0
    %998 = vmatpush1.bf16.xpose.msra.mxu0 %v979
    %999 = vmatprep.subr.bf16.mxu0 0
    %1000 = vmatpush1.bf16.xpose.msra.mxu0 %v978
    %1001 = vmatprep.subr.bf16.mxu0 0
    %1002 = vmatpush1.bf16.xpose.msra.mxu0 %v977
    %1003 = vmatprep.subr.bf16.mxu0 0
    %1004 = vmatpush1.bf16.xpose.msra.mxu0 %v976
    %1005 = vmatprep.subr.bf16.mxu0 0
    %1006 = vmatpush1.bf16.xpose.msra.mxu0 %v975
    %1007 = vmatprep.subr.bf16.mxu0 0
    %1008 = vmatpush2.bf16.xpose.msra.mxu0 0
    %1009 = vmatprep.subr.bf16.mxu0 0
    %1010 = vmatpush2.bf16.xpose.msra.mxu0 0
    %1011 = vmatprep.subr.bf16.mxu0 0
    %1012 = vmatpush2.bf16.xpose.msra.mxu0 0
    %1013 = vmatprep.subr.bf16.mxu0 0
    %1014 = vmatpush2.bf16.xpose.msra.mxu0 0
    %1015 = vmatprep.subr.bf16.mxu0 0
    %1016 = vmatpush2.bf16.xpose.msra.mxu0 0
    %1017 = vmatprep.subr.bf16.mxu0 0
    %1018 = vmatpush2.bf16.xpose.msra.mxu0 0
    %1019 = vmatprep.subr.bf16.mxu0 0
    %1020 = vmatpush2.bf16.xpose.msra.mxu0 0
    %1021 = vmatprep.subr.bf16.mxu0 0
    %1022 = vmatpush2.bf16.xpose.msra.mxu0 0
    %1023 = vmatprep.mubr.bf16.mxu0 0
    %1024 = vmatmul.mubr.bf16.gmra.mxu0 %v427
    %v1025 = vpop.f32.mrf.mxu0
    %v1026 = vadd.f32 0.0, %v1025
    %v1027 = vpop.f32.mrf.mxu0
    %v1028 = vpop.f32.mrf.mxu0
    %v1029 = vpop.f32.mrf.mxu0
    %1030 = vdwg.mxu0
    %v1047 = vunpack.c.l.b16 %v503
    %v1048 = vunpack.c.l.b16 %v504
    %v1049 = vunpack.c.l.b16 %v505
    %v1050 = vunpack.c.l.b16 %v506
    %v1051 = vunpack.c.l.b16 %v507
    %v1052 = vunpack.c.l.b16 %v508
    %v1053 = vunpack.c.l.b16 %v509
    %v1054 = vunpack.c.l.b16 %v510
    %v1055 = vunpack.c.l.b16 %v511
    %v1056 = vunpack.c.l.b16 %v512
    %v1057 = vunpack.c.l.b16 %v513
    %v1058 = vunpack.c.l.b16 %v514
    %v1059 = vunpack.c.l.b16 %v515
    %v1060 = vunpack.c.l.b16 %v516
    %v1061 = vunpack.c.l.b16 %v517
    %v1062 = vunpack.c.l.b16 %v518
    %v1063 = vpack.c.b16 %v1048, %v1047
    %v1064 = vpack.c.b16 %v1050, %v1049
    %v1065 = vpack.c.b16 %v1052, %v1051
    %v1066 = vpack.c.b16 %v1054, %v1053
    %v1067 = vpack.c.b16 %v1056, %v1055
    %v1068 = vpack.c.b16 %v1058, %v1057
    %v1069 = vpack.c.b16 %v1060, %v1059
    %v1070 = vpack.c.b16 %v1062, %v1061
    %1079 = vmatprep.subr.bf16.mxu0 0
    %1080 = vmatpush1.bf16.xpose.msra.mxu0 %v1070
    %1081 = vmatprep.subr.bf16.mxu0 0
    %1082 = vmatpush1.bf16.xpose.msra.mxu0 %v1069
    %1083 = vmatprep.subr.bf16.mxu0 0
    %1084 = vmatpush1.bf16.xpose.msra.mxu0 %v1068
    %1085 = vmatprep.subr.bf16.mxu0 0
    %1086 = vmatpush1.bf16.xpose.msra.mxu0 %v1067
    %1087 = vmatprep.subr.bf16.mxu0 0
    %1088 = vmatpush1.bf16.xpose.msra.mxu0 %v1066
    %1089 = vmatprep.subr.bf16.mxu0 0
    %1090 = vmatpush1.bf16.xpose.msra.mxu0 %v1065
    %1091 = vmatprep.subr.bf16.mxu0 0
    %1092 = vmatpush1.bf16.xpose.msra.mxu0 %v1064
    %1093 = vmatprep.subr.bf16.mxu0 0
    %1094 = vmatpush1.bf16.xpose.msra.mxu0 %v1063
    %1095 = vmatprep.subr.bf16.mxu0 0
    %1096 = vmatpush2.bf16.xpose.msra.mxu0 0
    %1097 = vmatprep.subr.bf16.mxu0 0
    %1098 = vmatpush2.bf16.xpose.msra.mxu0 0
    %1099 = vmatprep.subr.bf16.mxu0 0
    %1100 = vmatpush2.bf16.xpose.msra.mxu0 0
    %1101 = vmatprep.subr.bf16.mxu0 0
    %1102 = vmatpush2.bf16.xpose.msra.mxu0 0
    %1103 = vmatprep.subr.bf16.mxu0 0
    %1104 = vmatpush2.bf16.xpose.msra.mxu0 0
    %1105 = vmatprep.subr.bf16.mxu0 0
    %1106 = vmatpush2.bf16.xpose.msra.mxu0 0
    %1107 = vmatprep.subr.bf16.mxu0 0
    %1108 = vmatpush2.bf16.xpose.msra.mxu0 0
    %1109 = vmatprep.subr.bf16.mxu0 0
    %1110 = vmatpush2.bf16.xpose.msra.mxu0 0
    %1111 = vmatprep.mubr.bf16.mxu0 0
    %1112 = vmatmul.mubr.bf16.gmra.mxu0 %v428
    %v1113 = vpop.f32.mrf.mxu0
    %v1114 = vadd.f32 0.0, %v1113
    %v1115 = vpop.f32.mrf.mxu0
    %v1116 = vpop.f32.mrf.mxu0
    %v1117 = vpop.f32.mrf.mxu0
    %1118 = vdwg.mxu0
    %v1135 = vunpack.c.l.b16 %v519
    %v1136 = vunpack.c.l.b16 %v520
    %v1137 = vunpack.c.l.b16 %v521
    %v1138 = vunpack.c.l.b16 %v522
    %v1139 = vunpack.c.l.b16 %v523
    %v1140 = vunpack.c.l.b16 %v524
    %v1141 = vunpack.c.l.b16 %v525
    %v1142 = vunpack.c.l.b16 %v526
    %v1143 = vunpack.c.l.b16 %v527
    %v1144 = vunpack.c.l.b16 %v528
    %v1145 = vunpack.c.l.b16 %v529
    %v1146 = vunpack.c.l.b16 %v530
    %v1147 = vunpack.c.l.b16 %v531
    %v1148 = vunpack.c.l.b16 %v532
    %v1149 = vunpack.c.l.b16 %v533
    %v1150 = vunpack.c.l.b16 %v534
    %v1151 = vpack.c.b16 %v1136, %v1135
    %v1152 = vpack.c.b16 %v1138, %v1137
    %v1153 = vpack.c.b16 %v1140, %v1139
    %v1154 = vpack.c.b16 %v1142, %v1141
    %v1155 = vpack.c.b16 %v1144, %v1143
    %v1156 = vpack.c.b16 %v1146, %v1145
    %v1157 = vpack.c.b16 %v1148, %v1147
    %v1158 = vpack.c.b16 %v1150, %v1149
    %1167 = vmatprep.subr.bf16.mxu0 0
    %1168 = vmatpush1.bf16.xpose.msra.mxu0 %v1158
    %1169 = vmatprep.subr.bf16.mxu0 0
    %1170 = vmatpush1.bf16.xpose.msra.mxu0 %v1157
    %1171 = vmatprep.subr.bf16.mxu0 0
    %1172 = vmatpush1.bf16.xpose.msra.mxu0 %v1156
    %1173 = vmatprep.subr.bf16.mxu0 0
    %1174 = vmatpush1.bf16.xpose.msra.mxu0 %v1155
    %1175 = vmatprep.subr.bf16.mxu0 0
    %1176 = vmatpush1.bf16.xpose.msra.mxu0 %v1154
    %1177 = vmatprep.subr.bf16.mxu0 0
    %1178 = vmatpush1.bf16.xpose.msra.mxu0 %v1153
    %1179 = vmatprep.subr.bf16.mxu0 0
    %1180 = vmatpush1.bf16.xpose.msra.mxu0 %v1152
    %1181 = vmatprep.subr.bf16.mxu0 0
    %1182 = vmatpush1.bf16.xpose.msra.mxu0 %v1151
    %1183 = vmatprep.subr.bf16.mxu0 0
    %1184 = vmatpush2.bf16.xpose.msra.mxu0 0
    %1185 = vmatprep.subr.bf16.mxu0 0
    %1186 = vmatpush2.bf16.xpose.msra.mxu0 0
    %1187 = vmatprep.subr.bf16.mxu0 0
    %1188 = vmatpush2.bf16.xpose.msra.mxu0 0
    %1189 = vmatprep.subr.bf16.mxu0 0
    %1190 = vmatpush2.bf16.xpose.msra.mxu0 0
    %1191 = vmatprep.subr.bf16.mxu0 0
    %1192 = vmatpush2.bf16.xpose.msra.mxu0 0
    %1193 = vmatprep.subr.bf16.mxu0 0
    %1194 = vmatpush2.bf16.xpose.msra.mxu0 0
    %1195 = vmatprep.subr.bf16.mxu0 0
    %1196 = vmatpush2.bf16.xpose.msra.mxu0 0
    %1197 = vmatprep.subr.bf16.mxu0 0
    %1198 = vmatpush2.bf16.xpose.msra.mxu0 0
    %1199 = vmatprep.mubr.bf16.mxu0 0
    %1200 = vmatmul.mubr.bf16.gmra.mxu0 %v429
    %v1201 = vpop.f32.mrf.mxu0
    %v1202 = vadd.f32 0.0, %v1201
    %v1203 = vpop.f32.mrf.mxu0
    %v1204 = vpop.f32.mrf.mxu0
    %v1205 = vpop.f32.mrf.mxu0
    %1206 = vdwg.mxu0
    %v1223 = vunpack.c.l.b16 %v535
    %v1224 = vunpack.c.l.b16 %v536
    %v1225 = vunpack.c.l.b16 %v537
    %v1226 = vunpack.c.l.b16 %v538
    %v1227 = vunpack.c.l.b16 %v539
    %v1228 = vunpack.c.l.b16 %v540
    %v1229 = vunpack.c.l.b16 %v541
    %v1230 = vunpack.c.l.b16 %v542
    %v1231 = vunpack.c.l.b16 %v543
    %v1232 = vunpack.c.l.b16 %v544
    %v1233 = vunpack.c.l.b16 %v545
    %v1234 = vunpack.c.l.b16 %v546
    %v1235 = vunpack.c.l.b16 %v547
    %v1236 = vunpack.c.l.b16 %v548
    %v1237 = vunpack.c.l.b16 %v549
    %v1238 = vunpack.c.l.b16 %v550
    %v1239 = vpack.c.b16 %v1224, %v1223
    %v1240 = vpack.c.b16 %v1226, %v1225
    %v1241 = vpack.c.b16 %v1228, %v1227
    %v1242 = vpack.c.b16 %v1230, %v1229
    %v1243 = vpack.c.b16 %v1232, %v1231
    %v1244 = vpack.c.b16 %v1234, %v1233
    %v1245 = vpack.c.b16 %v1236, %v1235
    %v1246 = vpack.c.b16 %v1238, %v1237
    %1255 = vmatprep.subr.bf16.mxu0 0
    %1256 = vmatpush1.bf16.xpose.msra.mxu0 %v1246
    %1257 = vmatprep.subr.bf16.mxu0 0
    %1258 = vmatpush1.bf16.xpose.msra.mxu0 %v1245
    %1259 = vmatprep.subr.bf16.mxu0 0
    %1260 = vmatpush1.bf16.xpose.msra.mxu0 %v1244
    %1261 = vmatprep.subr.bf16.mxu0 0
    %1262 = vmatpush1.bf16.xpose.msra.mxu0 %v1243
    %1263 = vmatprep.subr.bf16.mxu0 0
    %1264 = vmatpush1.bf16.xpose.msra.mxu0 %v1242
    %1265 = vmatprep.subr.bf16.mxu0 0
    %1266 = vmatpush1.bf16.xpose.msra.mxu0 %v1241
    %1267 = vmatprep.subr.bf16.mxu0 0
    %1268 = vmatpush1.bf16.xpose.msra.mxu0 %v1240
    %1269 = vmatprep.subr.bf16.mxu0 0
    %1270 = vmatpush1.bf16.xpose.msra.mxu0 %v1239
    %1271 = vmatprep.subr.bf16.mxu0 0
    %1272 = vmatpush2.bf16.xpose.msra.mxu0 0
    %1273 = vmatprep.subr.bf16.mxu0 0
    %1274 = vmatpush2.bf16.xpose.msra.mxu0 0
    %1275 = vmatprep.subr.bf16.mxu0 0
    %1276 = vmatpush2.bf16.xpose.msra.mxu0 0
    %1277 = vmatprep.subr.bf16.mxu0 0
    %1278 = vmatpush2.bf16.xpose.msra.mxu0 0
    %1279 = vmatprep.subr.bf16.mxu0 0
    %1280 = vmatpush2.bf16.xpose.msra.mxu0 0
    %1281 = vmatprep.subr.bf16.mxu0 0
    %1282 = vmatpush2.bf16.xpose.msra.mxu0 0
    %1283 = vmatprep.subr.bf16.mxu0 0
    %1284 = vmatpush2.bf16.xpose.msra.mxu0 0
    %1285 = vmatprep.subr.bf16.mxu0 0
    %1286 = vmatpush2.bf16.xpose.msra.mxu0 0
    %1287 = vmatprep.mubr.bf16.mxu0 0
    %1288 = vmatmul.mubr.bf16.gmra.mxu0 %v430
    %v1289 = vpop.f32.mrf.mxu0
    %v1290 = vadd.f32 0.0, %v1289
    %v1291 = vpop.f32.mrf.mxu0
    %v1292 = vpop.f32.mrf.mxu0
    %v1293 = vpop.f32.mrf.mxu0
    %1294 = vdwg.mxu0
    %v1311 = vunpack.c.l.b16 %v551
    %v1312 = vunpack.c.l.b16 %v552
    %v1313 = vunpack.c.l.b16 %v553
    %v1314 = vunpack.c.l.b16 %v554
    %v1315 = vunpack.c.l.b16 %v555
    %v1316 = vunpack.c.l.b16 %v556
    %v1317 = vunpack.c.l.b16 %v557
    %v1318 = vunpack.c.l.b16 %v558
    %v1319 = vunpack.c.l.b16 %v559
    %v1320 = vunpack.c.l.b16 %v560
    %v1321 = vunpack.c.l.b16 %v561
    %v1322 = vunpack.c.l.b16 %v562
    %v1323 = vunpack.c.l.b16 %v563
    %v1324 = vunpack.c.l.b16 %v564
    %v1325 = vunpack.c.l.b16 %v565
    %v1326 = vunpack.c.l.b16 %v566
    %v1327 = vpack.c.b16 %v1312, %v1311
    %v1328 = vpack.c.b16 %v1314, %v1313
    %v1329 = vpack.c.b16 %v1316, %v1315
    %v1330 = vpack.c.b16 %v1318, %v1317
    %v1331 = vpack.c.b16 %v1320, %v1319
    %v1332 = vpack.c.b16 %v1322, %v1321
    %v1333 = vpack.c.b16 %v1324, %v1323
    %v1334 = vpack.c.b16 %v1326, %v1325
    %1343 = vmatprep.subr.bf16.mxu0 0
    %1344 = vmatpush1.bf16.xpose.msra.mxu0 %v1334
    %1345 = vmatprep.subr.bf16.mxu0 0
    %1346 = vmatpush1.bf16.xpose.msra.mxu0 %v1333
    %1347 = vmatprep.subr.bf16.mxu0 0
    %1348 = vmatpush1.bf16.xpose.msra.mxu0 %v1332
    %1349 = vmatprep.subr.bf16.mxu0 0
    %1350 = vmatpush1.bf16.xpose.msra.mxu0 %v1331
    %1351 = vmatprep.subr.bf16.mxu0 0
    %1352 = vmatpush1.bf16.xpose.msra.mxu0 %v1330
    %1353 = vmatprep.subr.bf16.mxu0 0
    %1354 = vmatpush1.bf16.xpose.msra.mxu0 %v1329
    %1355 = vmatprep.subr.bf16.mxu0 0
    %1356 = vmatpush1.bf16.xpose.msra.mxu0 %v1328
    %1357 = vmatprep.subr.bf16.mxu0 0
    %1358 = vmatpush1.bf16.xpose.msra.mxu0 %v1327
    %1359 = vmatprep.subr.bf16.mxu0 0
    %1360 = vmatpush2.bf16.xpose.msra.mxu0 0
    %1361 = vmatprep.subr.bf16.mxu0 0
    %1362 = vmatpush2.bf16.xpose.msra.mxu0 0
    %1363 = vmatprep.subr.bf16.mxu0 0
    %1364 = vmatpush2.bf16.xpose.msra.mxu0 0
    %1365 = vmatprep.subr.bf16.mxu0 0
    %1366 = vmatpush2.bf16.xpose.msra.mxu0 0
    %1367 = vmatprep.subr.bf16.mxu0 0
    %1368 = vmatpush2.bf16.xpose.msra.mxu0 0
    %1369 = vmatprep.subr.bf16.mxu0 0
    %1370 = vmatpush2.bf16.xpose.msra.mxu0 0
    %1371 = vmatprep.subr.bf16.mxu0 0
    %1372 = vmatpush2.bf16.xpose.msra.mxu0 0
    %1373 = vmatprep.subr.bf16.mxu0 0
    %1374 = vmatpush2.bf16.xpose.msra.mxu0 0
    %1375 = vmatprep.mubr.bf16.mxu0 0
    %1376 = vmatmul.mubr.bf16.gmra.mxu0 %v431
    %v1377 = vpop.f32.mrf.mxu0
    %v1378 = vadd.f32 0.0, %v1377
    %v1379 = vpop.f32.mrf.mxu0
    %v1380 = vpop.f32.mrf.mxu0
    %v1381 = vpop.f32.mrf.mxu0
    %1382 = vdwg.mxu0
    %v1399 = vunpack.c.l.b16 %v567
    %v1400 = vunpack.c.l.b16 %v568
    %v1401 = vunpack.c.l.b16 %v569
    %v1402 = vunpack.c.l.b16 %v570
    %v1403 = vunpack.c.l.b16 %v571
    %v1404 = vunpack.c.l.b16 %v572
    %v1405 = vunpack.c.l.b16 %v573
    %v1406 = vunpack.c.l.b16 %v574
    %v1407 = vunpack.c.l.b16 %v575
    %v1408 = vunpack.c.l.b16 %v576
    %v1409 = vunpack.c.l.b16 %v577
    %v1410 = vunpack.c.l.b16 %v578
    %v1411 = vunpack.c.l.b16 %v579
    %v1412 = vunpack.c.l.b16 %v580
    %v1413 = vunpack.c.l.b16 %v581
    %v1414 = vunpack.c.l.b16 %v582
    %v1415 = vpack.c.b16 %v1400, %v1399
    %v1416 = vpack.c.b16 %v1402, %v1401
    %v1417 = vpack.c.b16 %v1404, %v1403
    %v1418 = vpack.c.b16 %v1406, %v1405
    %v1419 = vpack.c.b16 %v1408, %v1407
    %v1420 = vpack.c.b16 %v1410, %v1409
    %v1421 = vpack.c.b16 %v1412, %v1411
    %v1422 = vpack.c.b16 %v1414, %v1413
    %1431 = vmatprep.subr.bf16.mxu0 0
    %1432 = vmatpush1.bf16.xpose.msra.mxu0 %v1422
    %1433 = vmatprep.subr.bf16.mxu0 0
    %1434 = vmatpush1.bf16.xpose.msra.mxu0 %v1421
    %1435 = vmatprep.subr.bf16.mxu0 0
    %1436 = vmatpush1.bf16.xpose.msra.mxu0 %v1420
    %1437 = vmatprep.subr.bf16.mxu0 0
    %1438 = vmatpush1.bf16.xpose.msra.mxu0 %v1419
    %1439 = vmatprep.subr.bf16.mxu0 0
    %1440 = vmatpush1.bf16.xpose.msra.mxu0 %v1418
    %1441 = vmatprep.subr.bf16.mxu0 0
    %1442 = vmatpush1.bf16.xpose.msra.mxu0 %v1417
    %1443 = vmatprep.subr.bf16.mxu0 0
    %1444 = vmatpush1.bf16.xpose.msra.mxu0 %v1416
    %1445 = vmatprep.subr.bf16.mxu0 0
    %1446 = vmatpush1.bf16.xpose.msra.mxu0 %v1415
    %1447 = vmatprep.subr.bf16.mxu0 0
    %1448 = vmatpush2.bf16.xpose.msra.mxu0 0
    %1449 = vmatprep.subr.bf16.mxu0 0
    %1450 = vmatpush2.bf16.xpose.msra.mxu0 0
    %1451 = vmatprep.subr.bf16.mxu0 0
    %1452 = vmatpush2.bf16.xpose.msra.mxu0 0
    %1453 = vmatprep.subr.bf16.mxu0 0
    %1454 = vmatpush2.bf16.xpose.msra.mxu0 0
    %1455 = vmatprep.subr.bf16.mxu0 0
    %1456 = vmatpush2.bf16.xpose.msra.mxu0 0
    %1457 = vmatprep.subr.bf16.mxu0 0
    %1458 = vmatpush2.bf16.xpose.msra.mxu0 0
    %1459 = vmatprep.subr.bf16.mxu0 0
    %1460 = vmatpush2.bf16.xpose.msra.mxu0 0
    %1461 = vmatprep.subr.bf16.mxu0 0
    %1462 = vmatpush2.bf16.xpose.msra.mxu0 0
    %1463 = vmatprep.mubr.bf16.mxu0 0
    %1464 = vmatmul.mubr.bf16.gmra.mxu0 %v432
    %v1465 = vpop.f32.mrf.mxu0
    %v1466 = vadd.f32 0.0, %v1465
    %v1467 = vpop.f32.mrf.mxu0
    %v1468 = vpop.f32.mrf.mxu0
    %v1469 = vpop.f32.mrf.mxu0
    %1470 = vdwg.mxu0
    %v1487 = vunpack.c.l.b16 %v583
    %v1488 = vunpack.c.l.b16 %v584
    %v1489 = vunpack.c.l.b16 %v585
    %v1490 = vunpack.c.l.b16 %v586
    %v1491 = vunpack.c.l.b16 %v587
    %v1492 = vunpack.c.l.b16 %v588
    %v1493 = vunpack.c.l.b16 %v589
    %v1494 = vunpack.c.l.b16 %v590
    %v1495 = vunpack.c.l.b16 %v591
    %v1496 = vunpack.c.l.b16 %v592
    %v1497 = vunpack.c.l.b16 %v593
    %v1498 = vunpack.c.l.b16 %v594
    %v1499 = vunpack.c.l.b16 %v595
    %v1500 = vunpack.c.l.b16 %v596
    %v1501 = vunpack.c.l.b16 %v597
    %v1502 = vunpack.c.l.b16 %v598
    %v1503 = vpack.c.b16 %v1488, %v1487
    %v1504 = vpack.c.b16 %v1490, %v1489
    %v1505 = vpack.c.b16 %v1492, %v1491
    %v1506 = vpack.c.b16 %v1494, %v1493
    %v1507 = vpack.c.b16 %v1496, %v1495
    %v1508 = vpack.c.b16 %v1498, %v1497
    %v1509 = vpack.c.b16 %v1500, %v1499
    %v1510 = vpack.c.b16 %v1502, %v1501
    %1519 = vmatprep.subr.bf16.mxu0 0
    %1520 = vmatpush1.bf16.xpose.msra.mxu0 %v1510
    %1521 = vmatprep.subr.bf16.mxu0 0
    %1522 = vmatpush1.bf16.xpose.msra.mxu0 %v1509
    %1523 = vmatprep.subr.bf16.mxu0 0
    %1524 = vmatpush1.bf16.xpose.msra.mxu0 %v1508
    %1525 = vmatprep.subr.bf16.mxu0 0
    %1526 = vmatpush1.bf16.xpose.msra.mxu0 %v1507
    %1527 = vmatprep.subr.bf16.mxu0 0
    %1528 = vmatpush1.bf16.xpose.msra.mxu0 %v1506
    %1529 = vmatprep.subr.bf16.mxu0 0
    %1530 = vmatpush1.bf16.xpose.msra.mxu0 %v1505
    %1531 = vmatprep.subr.bf16.mxu0 0
    %1532 = vmatpush1.bf16.xpose.msra.mxu0 %v1504
    %1533 = vmatprep.subr.bf16.mxu0 0
    %1534 = vmatpush1.bf16.xpose.msra.mxu0 %v1503
    %1535 = vmatprep.subr.bf16.mxu0 0
    %1536 = vmatpush2.bf16.xpose.msra.mxu0 0
    %1537 = vmatprep.subr.bf16.mxu0 0
    %1538 = vmatpush2.bf16.xpose.msra.mxu0 0
    %1539 = vmatprep.subr.bf16.mxu0 0
    %1540 = vmatpush2.bf16.xpose.msra.mxu0 0
    %1541 = vmatprep.subr.bf16.mxu0 0
    %1542 = vmatpush2.bf16.xpose.msra.mxu0 0
    %1543 = vmatprep.subr.bf16.mxu0 0
    %1544 = vmatpush2.bf16.xpose.msra.mxu0 0
    %1545 = vmatprep.subr.bf16.mxu0 0
    %1546 = vmatpush2.bf16.xpose.msra.mxu0 0
    %1547 = vmatprep.subr.bf16.mxu0 0
    %1548 = vmatpush2.bf16.xpose.msra.mxu0 0
    %1549 = vmatprep.subr.bf16.mxu0 0
    %1550 = vmatpush2.bf16.xpose.msra.mxu0 0
    %1551 = vmatprep.mubr.bf16.mxu0 0
    %1552 = vmatmul.mubr.bf16.gmra.mxu0 %v433
    %v1553 = vpop.f32.mrf.mxu0
    %v1554 = vadd.f32 0.0, %v1553
    %v1555 = vpop.f32.mrf.mxu0
    %v1556 = vpop.f32.mrf.mxu0
    %v1557 = vpop.f32.mrf.mxu0
    %1558 = vdwg.mxu0
    %v1575 = vunpack.c.l.b16 %v599
    %v1576 = vunpack.c.l.b16 %v600
    %v1577 = vunpack.c.l.b16 %v601
    %v1578 = vunpack.c.l.b16 %v602
    %v1579 = vunpack.c.l.b16 %v603
    %v1580 = vunpack.c.l.b16 %v604
    %v1581 = vunpack.c.l.b16 %v605
    %v1582 = vunpack.c.l.b16 %v606
    %v1583 = vunpack.c.l.b16 %v607
    %v1584 = vunpack.c.l.b16 %v608
    %v1585 = vunpack.c.l.b16 %v609
    %v1586 = vunpack.c.l.b16 %v610
    %v1587 = vunpack.c.l.b16 %v611
    %v1588 = vunpack.c.l.b16 %v612
    %v1589 = vunpack.c.l.b16 %v613
    %v1590 = vunpack.c.l.b16 %v614
    %v1591 = vpack.c.b16 %v1576, %v1575
    %v1592 = vpack.c.b16 %v1578, %v1577
    %v1593 = vpack.c.b16 %v1580, %v1579
    %v1594 = vpack.c.b16 %v1582, %v1581
    %v1595 = vpack.c.b16 %v1584, %v1583
    %v1596 = vpack.c.b16 %v1586, %v1585
    %v1597 = vpack.c.b16 %v1588, %v1587
    %v1598 = vpack.c.b16 %v1590, %v1589
    %1607 = vmatprep.subr.bf16.mxu0 0
    %1608 = vmatpush1.bf16.xpose.msra.mxu0 %v1598
    %1609 = vmatprep.subr.bf16.mxu0 0
    %1610 = vmatpush1.bf16.xpose.msra.mxu0 %v1597
    %1611 = vmatprep.subr.bf16.mxu0 0
    %1612 = vmatpush1.bf16.xpose.msra.mxu0 %v1596
    %1613 = vmatprep.subr.bf16.mxu0 0
    %1614 = vmatpush1.bf16.xpose.msra.mxu0 %v1595
    %1615 = vmatprep.subr.bf16.mxu0 0
    %1616 = vmatpush1.bf16.xpose.msra.mxu0 %v1594
    %1617 = vmatprep.subr.bf16.mxu0 0
    %1618 = vmatpush1.bf16.xpose.msra.mxu0 %v1593
    %1619 = vmatprep.subr.bf16.mxu0 0
    %1620 = vmatpush1.bf16.xpose.msra.mxu0 %v1592
    %1621 = vmatprep.subr.bf16.mxu0 0
    %1622 = vmatpush1.bf16.xpose.msra.mxu0 %v1591
    %1623 = vmatprep.subr.bf16.mxu0 0
    %1624 = vmatpush2.bf16.xpose.msra.mxu0 0
    %1625 = vmatprep.subr.bf16.mxu0 0
    %1626 = vmatpush2.bf16.xpose.msra.mxu0 0
    %1627 = vmatprep.subr.bf16.mxu0 0
    %1628 = vmatpush2.bf16.xpose.msra.mxu0 0
    %1629 = vmatprep.subr.bf16.mxu0 0
    %1630 = vmatpush2.bf16.xpose.msra.mxu0 0
    %1631 = vmatprep.subr.bf16.mxu0 0
    %1632 = vmatpush2.bf16.xpose.msra.mxu0 0
    %1633 = vmatprep.subr.bf16.mxu0 0
    %1634 = vmatpush2.bf16.xpose.msra.mxu0 0
    %1635 = vmatprep.subr.bf16.mxu0 0
    %1636 = vmatpush2.bf16.xpose.msra.mxu0 0
    %1637 = vmatprep.subr.bf16.mxu0 0
    %1638 = vmatpush2.bf16.xpose.msra.mxu0 0
    %1639 = vmatprep.mubr.bf16.mxu0 0
    %1640 = vmatmul.mubr.bf16.gmra.mxu0 %v434
    %v1641 = vpop.f32.mrf.mxu0
    %v1642 = vadd.f32 0.0, %v1641
    %v1643 = vpop.f32.mrf.mxu0
    %v1644 = vpop.f32.mrf.mxu0
    %v1645 = vpop.f32.mrf.mxu0
    %1646 = vdwg.mxu0
    %v1663 = vunpack.c.l.b16 %v615
    %v1664 = vunpack.c.l.b16 %v616
    %v1665 = vunpack.c.l.b16 %v617
    %v1666 = vunpack.c.l.b16 %v618
    %v1667 = vunpack.c.l.b16 %v619
    %v1668 = vunpack.c.l.b16 %v620
    %v1669 = vunpack.c.l.b16 %v621
    %v1670 = vunpack.c.l.b16 %v622
    %v1671 = vunpack.c.l.b16 %v623
    %v1672 = vunpack.c.l.b16 %v624
    %v1673 = vunpack.c.l.b16 %v625
    %v1674 = vunpack.c.l.b16 %v626
    %v1675 = vunpack.c.l.b16 %v627
    %v1676 = vunpack.c.l.b16 %v628
    %v1677 = vunpack.c.l.b16 %v629
    %v1678 = vunpack.c.l.b16 %v630
    %v1679 = vpack.c.b16 %v1664, %v1663
    %v1680 = vpack.c.b16 %v1666, %v1665
    %v1681 = vpack.c.b16 %v1668, %v1667
    %v1682 = vpack.c.b16 %v1670, %v1669
    %v1683 = vpack.c.b16 %v1672, %v1671
    %v1684 = vpack.c.b16 %v1674, %v1673
    %v1685 = vpack.c.b16 %v1676, %v1675
    %v1686 = vpack.c.b16 %v1678, %v1677
    %1695 = vmatprep.subr.bf16.mxu0 0
    %1696 = vmatpush1.bf16.xpose.msra.mxu0 %v1686
    %1697 = vmatprep.subr.bf16.mxu0 0
    %1698 = vmatpush1.bf16.xpose.msra.mxu0 %v1685
    %1699 = vmatprep.subr.bf16.mxu0 0
    %1700 = vmatpush1.bf16.xpose.msra.mxu0 %v1684
    %1701 = vmatprep.subr.bf16.mxu0 0
    %1702 = vmatpush1.bf16.xpose.msra.mxu0 %v1683
    %1703 = vmatprep.subr.bf16.mxu0 0
    %1704 = vmatpush1.bf16.xpose.msra.mxu0 %v1682
    %1705 = vmatprep.subr.bf16.mxu0 0
    %1706 = vmatpush1.bf16.xpose.msra.mxu0 %v1681
    %1707 = vmatprep.subr.bf16.mxu0 0
    %1708 = vmatpush1.bf16.xpose.msra.mxu0 %v1680
    %1709 = vmatprep.subr.bf16.mxu0 0
    %1710 = vmatpush1.bf16.xpose.msra.mxu0 %v1679
    %1711 = vmatprep.subr.bf16.mxu0 0
    %1712 = vmatpush2.bf16.xpose.msra.mxu0 0
    %1713 = vmatprep.subr.bf16.mxu0 0
    %1714 = vmatpush2.bf16.xpose.msra.mxu0 0
    %1715 = vmatprep.subr.bf16.mxu0 0
    %1716 = vmatpush2.bf16.xpose.msra.mxu0 0
    %1717 = vmatprep.subr.bf16.mxu0 0
    %1718 = vmatpush2.bf16.xpose.msra.mxu0 0
    %1719 = vmatprep.subr.bf16.mxu0 0
    %1720 = vmatpush2.bf16.xpose.msra.mxu0 0
    %1721 = vmatprep.subr.bf16.mxu0 0
    %1722 = vmatpush2.bf16.xpose.msra.mxu0 0
    %1723 = vmatprep.subr.bf16.mxu0 0
    %1724 = vmatpush2.bf16.xpose.msra.mxu0 0
    %1725 = vmatprep.subr.bf16.mxu0 0
    %1726 = vmatpush2.bf16.xpose.msra.mxu0 0
    %1727 = vmatprep.mubr.bf16.mxu0 0
    %1728 = vmatmul.mubr.bf16.gmra.mxu0 %v435
    %v1729 = vpop.f32.mrf.mxu0
    %v1730 = vadd.f32 0.0, %v1729
    %v1731 = vpop.f32.mrf.mxu0
    %v1732 = vpop.f32.mrf.mxu0
    %v1733 = vpop.f32.mrf.mxu0
    %1734 = vdwg.mxu0
    %v1751 = vunpack.c.l.b16 %v631
    %v1752 = vunpack.c.l.b16 %v632
    %v1753 = vunpack.c.l.b16 %v633
    %v1754 = vunpack.c.l.b16 %v634
    %v1755 = vunpack.c.l.b16 %v635
    %v1756 = vunpack.c.l.b16 %v636
    %v1757 = vunpack.c.l.b16 %v637
    %v1758 = vunpack.c.l.b16 %v638
    %v1759 = vunpack.c.l.b16 %v639
    %v1760 = vunpack.c.l.b16 %v640
    %v1761 = vunpack.c.l.b16 %v641
    %v1762 = vunpack.c.l.b16 %v642
    %v1763 = vunpack.c.l.b16 %v643
    %v1764 = vunpack.c.l.b16 %v644
    %v1765 = vunpack.c.l.b16 %v645
    %v1766 = vunpack.c.l.b16 %v646
    %v1767 = vpack.c.b16 %v1752, %v1751
    %v1768 = vpack.c.b16 %v1754, %v1753
    %v1769 = vpack.c.b16 %v1756, %v1755
    %v1770 = vpack.c.b16 %v1758, %v1757
    %v1771 = vpack.c.b16 %v1760, %v1759
    %v1772 = vpack.c.b16 %v1762, %v1761
    %v1773 = vpack.c.b16 %v1764, %v1763
    %v1774 = vpack.c.b16 %v1766, %v1765
    %1783 = vmatprep.subr.bf16.mxu0 0
    %1784 = vmatpush1.bf16.xpose.msra.mxu0 %v1774
    %1785 = vmatprep.subr.bf16.mxu0 0
    %1786 = vmatpush1.bf16.xpose.msra.mxu0 %v1773
    %1787 = vmatprep.subr.bf16.mxu0 0
    %1788 = vmatpush1.bf16.xpose.msra.mxu0 %v1772
    %1789 = vmatprep.subr.bf16.mxu0 0
    %1790 = vmatpush1.bf16.xpose.msra.mxu0 %v1771
    %1791 = vmatprep.subr.bf16.mxu0 0
    %1792 = vmatpush1.bf16.xpose.msra.mxu0 %v1770
    %1793 = vmatprep.subr.bf16.mxu0 0
    %1794 = vmatpush1.bf16.xpose.msra.mxu0 %v1769
    %1795 = vmatprep.subr.bf16.mxu0 0
    %1796 = vmatpush1.bf16.xpose.msra.mxu0 %v1768
    %1797 = vmatprep.subr.bf16.mxu0 0
    %1798 = vmatpush1.bf16.xpose.msra.mxu0 %v1767
    %1799 = vmatprep.subr.bf16.mxu0 0
    %1800 = vmatpush2.bf16.xpose.msra.mxu0 0
    %1801 = vmatprep.subr.bf16.mxu0 0
    %1802 = vmatpush2.bf16.xpose.msra.mxu0 0
    %1803 = vmatprep.subr.bf16.mxu0 0
    %1804 = vmatpush2.bf16.xpose.msra.mxu0 0
    %1805 = vmatprep.subr.bf16.mxu0 0
    %1806 = vmatpush2.bf16.xpose.msra.mxu0 0
    %1807 = vmatprep.subr.bf16.mxu0 0
    %1808 = vmatpush2.bf16.xpose.msra.mxu0 0
    %1809 = vmatprep.subr.bf16.mxu0 0
    %1810 = vmatpush2.bf16.xpose.msra.mxu0 0
    %1811 = vmatprep.subr.bf16.mxu0 0
    %1812 = vmatpush2.bf16.xpose.msra.mxu0 0
    %1813 = vmatprep.subr.bf16.mxu0 0
    %1814 = vmatpush2.bf16.xpose.msra.mxu0 0
    %1815 = vmatprep.mubr.bf16.mxu0 0
    %1816 = vmatmul.mubr.bf16.gmra.mxu0 %v436
    %v1817 = vpop.f32.mrf.mxu0
    %v1818 = vadd.f32 0.0, %v1817
    %v1819 = vpop.f32.mrf.mxu0
    %v1820 = vpop.f32.mrf.mxu0
    %v1821 = vpop.f32.mrf.mxu0
    %1822 = vdwg.mxu0
    %v1839 = vunpack.c.l.b16 %v647
    %v1840 = vunpack.c.l.b16 %v648
    %v1841 = vunpack.c.l.b16 %v649
    %v1842 = vunpack.c.l.b16 %v650
    %v1843 = vunpack.c.l.b16 %v651
    %v1844 = vunpack.c.l.b16 %v652
    %v1845 = vunpack.c.l.b16 %v653
    %v1846 = vunpack.c.l.b16 %v654
    %v1847 = vunpack.c.l.b16 %v655
    %v1848 = vunpack.c.l.b16 %v656
    %v1849 = vunpack.c.l.b16 %v657
    %v1850 = vunpack.c.l.b16 %v658
    %v1851 = vunpack.c.l.b16 %v659
    %v1852 = vunpack.c.l.b16 %v660
    %v1853 = vunpack.c.l.b16 %v661
    %v1854 = vunpack.c.l.b16 %v662
    %v1855 = vpack.c.b16 %v1840, %v1839
    %v1856 = vpack.c.b16 %v1842, %v1841
    %v1857 = vpack.c.b16 %v1844, %v1843
    %v1858 = vpack.c.b16 %v1846, %v1845
    %v1859 = vpack.c.b16 %v1848, %v1847
    %v1860 = vpack.c.b16 %v1850, %v1849
    %v1861 = vpack.c.b16 %v1852, %v1851
    %v1862 = vpack.c.b16 %v1854, %v1853
    %1871 = vmatprep.subr.bf16.mxu0 0
    %1872 = vmatpush1.bf16.xpose.msra.mxu0 %v1862
    %1873 = vmatprep.subr.bf16.mxu0 0
    %1874 = vmatpush1.bf16.xpose.msra.mxu0 %v1861
    %1875 = vmatprep.subr.bf16.mxu0 0
    %1876 = vmatpush1.bf16.xpose.msra.mxu0 %v1860
    %1877 = vmatprep.subr.bf16.mxu0 0
    %1878 = vmatpush1.bf16.xpose.msra.mxu0 %v1859
    %1879 = vmatprep.subr.bf16.mxu0 0
    %1880 = vmatpush1.bf16.xpose.msra.mxu0 %v1858
    %1881 = vmatprep.subr.bf16.mxu0 0
    %1882 = vmatpush1.bf16.xpose.msra.mxu0 %v1857
    %1883 = vmatprep.subr.bf16.mxu0 0
    %1884 = vmatpush1.bf16.xpose.msra.mxu0 %v1856
    %1885 = vmatprep.subr.bf16.mxu0 0
    %1886 = vmatpush1.bf16.xpose.msra.mxu0 %v1855
    %1887 = vmatprep.subr.bf16.mxu0 0
    %1888 = vmatpush2.bf16.xpose.msra.mxu0 0
    %1889 = vmatprep.subr.bf16.mxu0 0
    %1890 = vmatpush2.bf16.xpose.msra.mxu0 0
    %1891 = vmatprep.subr.bf16.mxu0 0
    %1892 = vmatpush2.bf16.xpose.msra.mxu0 0
    %1893 = vmatprep.subr.bf16.mxu0 0
    %1894 = vmatpush2.bf16.xpose.msra.mxu0 0
    %1895 = vmatprep.subr.bf16.mxu0 0
    %1896 = vmatpush2.bf16.xpose.msra.mxu0 0
    %1897 = vmatprep.subr.bf16.mxu0 0
    %1898 = vmatpush2.bf16.xpose.msra.mxu0 0
    %1899 = vmatprep.subr.bf16.mxu0 0
    %1900 = vmatpush2.bf16.xpose.msra.mxu0 0
    %1901 = vmatprep.subr.bf16.mxu0 0
    %1902 = vmatpush2.bf16.xpose.msra.mxu0 0
    %1903 = vmatprep.mubr.bf16.mxu0 0
    %1904 = vmatmul.mubr.bf16.gmra.mxu0 %v437
    %v1905 = vpop.f32.mrf.mxu0
    %v1906 = vadd.f32 0.0, %v1905
    %v1907 = vpop.f32.mrf.mxu0
    %v1908 = vpop.f32.mrf.mxu0
    %v1909 = vpop.f32.mrf.mxu0
    %1910 = vdwg.mxu0
    %v1927 = vunpack.c.l.b16 %v663
    %v1928 = vunpack.c.l.b16 %v664
    %v1929 = vunpack.c.l.b16 %v665
    %v1930 = vunpack.c.l.b16 %v666
    %v1931 = vunpack.c.l.b16 %v667
    %v1932 = vunpack.c.l.b16 %v668
    %v1933 = vunpack.c.l.b16 %v669
    %v1934 = vunpack.c.l.b16 %v670
    %v1935 = vunpack.c.l.b16 %v671
    %v1936 = vunpack.c.l.b16 %v672
    %v1937 = vunpack.c.l.b16 %v673
    %v1938 = vunpack.c.l.b16 %v674
    %v1939 = vunpack.c.l.b16 %v675
    %v1940 = vunpack.c.l.b16 %v676
    %v1941 = vunpack.c.l.b16 %v677
    %v1942 = vunpack.c.l.b16 %v678
    %v1943 = vpack.c.b16 %v1928, %v1927
    %v1944 = vpack.c.b16 %v1930, %v1929
    %v1945 = vpack.c.b16 %v1932, %v1931
    %v1946 = vpack.c.b16 %v1934, %v1933
    %v1947 = vpack.c.b16 %v1936, %v1935
    %v1948 = vpack.c.b16 %v1938, %v1937
    %v1949 = vpack.c.b16 %v1940, %v1939
    %v1950 = vpack.c.b16 %v1942, %v1941
    %1959 = vmatprep.subr.bf16.mxu0 0
    %1960 = vmatpush1.bf16.xpose.msra.mxu0 %v1950
    %1961 = vmatprep.subr.bf16.mxu0 0
    %1962 = vmatpush1.bf16.xpose.msra.mxu0 %v1949
    %1963 = vmatprep.subr.bf16.mxu0 0
    %1964 = vmatpush1.bf16.xpose.msra.mxu0 %v1948
    %1965 = vmatprep.subr.bf16.mxu0 0
    %1966 = vmatpush1.bf16.xpose.msra.mxu0 %v1947
    %1967 = vmatprep.subr.bf16.mxu0 0
    %1968 = vmatpush1.bf16.xpose.msra.mxu0 %v1946
    %1969 = vmatprep.subr.bf16.mxu0 0
    %1970 = vmatpush1.bf16.xpose.msra.mxu0 %v1945
    %1971 = vmatprep.subr.bf16.mxu0 0
    %1972 = vmatpush1.bf16.xpose.msra.mxu0 %v1944
    %1973 = vmatprep.subr.bf16.mxu0 0
    %1974 = vmatpush1.bf16.xpose.msra.mxu0 %v1943
    %1975 = vmatprep.subr.bf16.mxu0 0
    %1976 = vmatpush2.bf16.xpose.msra.mxu0 0
    %1977 = vmatprep.subr.bf16.mxu0 0
    %1978 = vmatpush2.bf16.xpose.msra.mxu0 0
    %1979 = vmatprep.subr.bf16.mxu0 0
    %1980 = vmatpush2.bf16.xpose.msra.mxu0 0
    %1981 = vmatprep.subr.bf16.mxu0 0
    %1982 = vmatpush2.bf16.xpose.msra.mxu0 0
    %1983 = vmatprep.subr.bf16.mxu0 0
    %1984 = vmatpush2.bf16.xpose.msra.mxu0 0
    %1985 = vmatprep.subr.bf16.mxu0 0
    %1986 = vmatpush2.bf16.xpose.msra.mxu0 0
    %1987 = vmatprep.subr.bf16.mxu0 0
    %1988 = vmatpush2.bf16.xpose.msra.mxu0 0
    %1989 = vmatprep.subr.bf16.mxu0 0
    %1990 = vmatpush2.bf16.xpose.msra.mxu0 0
    %1991 = vmatprep.mubr.bf16.mxu0 0
    %1992 = vmatmul.mubr.bf16.gmra.mxu0 %v438
    %v1993 = vpop.f32.mrf.mxu0
    %v1994 = vadd.f32 0.0, %v1993
    %v1995 = vpop.f32.mrf.mxu0
    %v1996 = vpop.f32.mrf.mxu0
    %v1997 = vpop.f32.mrf.mxu0
    %1998 = vdwg.mxu0
    %v1999 = vmul.f32 %v381, %v762
    %v2000 = vmul.f32 %v383, %v850
    %v2001 = vmul.f32 %v385, %v938
    %v2002 = vmul.f32 %v387, %v1026
    %v2003 = vmul.f32 %v389, %v1114
    %v2004 = vmul.f32 %v391, %v1202
    %v2005 = vmul.f32 %v393, %v1290
    %v2006 = vmul.f32 %v395, %v1378
    %v2007 = vmul.f32 %v397, %v1466
    %v2008 = vmul.f32 %v399, %v1554
    %v2009 = vmul.f32 %v401, %v1642
    %v2010 = vmul.f32 %v403, %v1730
    %v2011 = vmul.f32 %v405, %v1818
    %v2012 = vmul.f32 %v407, %v1906
    %v2013 = vmul.f32 %v409, %v1994
    %v2014 = vadd.f32 %v1999, %v2000
    %v2015 = vadd.f32 %v2014, %v2001
    %v2016 = vadd.f32 %v2015, %v2002
    %v2017 = vadd.f32 %v2016, %v2003
    %v2018 = vadd.f32 %v2017, %v2004
    %v2019 = vadd.f32 %v2018, %v2005
    %v2020 = vadd.f32 %v2019, %v2006
    %v2021 = vadd.f32 %v2020, %v2007
    %v2022 = vadd.f32 %v2021, %v2008
    %v2023 = vadd.f32 %v2022, %v2009
    %v2024 = vadd.f32 %v2023, %v2010
    %v2025 = vadd.f32 %v2024, %v2011
    %v2026 = vadd.f32 %v2025, %v2012
    %v2027 = vadd.f32 %v2026, %v2013
    %v2028 = vmul.f32 %v2027, 240.0
    %v2029 = vrcp.pop %v423
    %v2030 = vmul.f32 %v2028, %v2029
    %2031 = vst [vmem:[#allocation10] sm:$0xff] %v2030
    // Predicated region
    $region34: #{tpu_custom_call.1} parent=1 // pred_check
      _
    $region35: #{tpu_custom_call.1} parent=1 // pred_check_branch
      %2033 = sbr.rel (0) target = $region37
    $region36: #{tpu_custom_call.1} parent=1 // pred_region
      %s2035 = ssub.s32 128, 128
      %2036 = vsyncadd [#allocation4], %s2035
      %s2038 = sshll.u32 [#allocation10], 4
      %s2039 = int_to_ptr.vmem [resolvable:$true] %s2038
      %2041 = dma.vmem_to_hbm [thread:$0]  %s2039, 128, %s4, [#allocation4]
    $region37: #{tpu_custom_call.1} parent=1 // pred_fallthru
      _
    // Predicated region
    $region38: #{tpu_custom_call.1} parent=1 // pred_check
      _
    $region39: #{tpu_custom_call.1} parent=1 // pred_check_branch
      %2043 = sbr.rel (0) target = $region41
    $region40: #{tpu_custom_call.1} parent=1 // pred_region
      %2044 = dma.done [#allocation4], 128
    $region41: #{tpu_custom_call.1} parent=1 // pred_fallthru
      _
    %2045 = vsyncpa [#allocation3], 1
    %2046 = vsyncpa [#allocation6], 1
    %2047 = vsyncpa [#allocation9], 1
    %2048 = vsyncpa [#allocation4], 1

</llo_original>
